<compile_context>
chip_gen: v5e
topology: v5e:2x2
jax: 0.10.0
libtpu: 0.0.40
codegen_flags: <defaults>
</compile_context>

<pallas_src>
import numpy as np
import jax
import jax.numpy as jnp
from jax.experimental import pallas as pl
from jax.experimental.pallas import tpu as pltpu


# ----------------------------- helpers -----------------------------

def _round_up(x, m):
    return ((x + m - 1) // m) * m


def _tile_m(M):
    """Row-tile size: as large as useful, but keep >= 2 parallel grid steps (v7x megacore)."""
    TM = min(512, _round_up(M, 8))
    if _round_up(M, TM) // TM < 2 and M > 8:
        TM = _round_up(pl.cdiv(M, 2), 8)
    return TM


# ----------------------------- Pallas kernels -----------------------------

def _conv_in_lrelu_kernel(x_ref, w_ref, o_ref):
    """Fused 1x1 conv (bf16 MXU, f32 acc) + InstanceNorm2d + LeakyReLU(0.01).

    x_ref: [P*Q, Cin] bf16 (one batch instance; spatial on sublanes, channels on lanes)
    w_ref: [Cin, Cout] bf16
    o_ref: [P*Q, Cout] f32
    """
    y = jnp.dot(x_ref[...], w_ref[...], preferred_element_type=jnp.float32)
    mean = jnp.mean(y, axis=0, keepdims=True)                 # per-channel over spatial
    var = jnp.mean((y - mean) ** 2, axis=0, keepdims=True)    # biased var (PyTorch IN)
    yn = (y - mean) * jax.lax.rsqrt(var + 1e-5)
    o_ref[...] = jnp.where(yn >= 0.0, yn, 0.01 * yn)


def _make_sum_matmul_kernel(n_in):
    """Kernel computing (x1 + ... + xn) @ w with the add fused into the matmul pass."""
    def kernel(*refs):
        x_refs, w_ref, o_ref = refs[:n_in], refs[n_in], refs[n_in + 1]
        acc = x_refs[0][...].astype(jnp.float32)
        for r in x_refs[1:]:
            acc = acc + r[...].astype(jnp.float32)
        o_ref[...] = jnp.dot(acc.astype(jnp.bfloat16), w_ref[...],
                             preferred_element_type=jnp.float32)
    return kernel


# ----------------------------- Pallas wrappers -----------------------------

def conv1x1_in_lrelu(x, w):
    """Fused Conv2d(1x1, bias=False) -> InstanceNorm2d -> LeakyReLU.  NHWC in / NHWC out.

    x: [B, P, Q, Cin] f32, w: [Cin, Cout] bf16.  Grid over batch (parallel)."""
    B, P, Q, Cin = x.shape
    Cout = w.shape[1]
    PQ = P * Q
    x3 = x.reshape(B, PQ, Cin).astype(jnp.bfloat16)
    out = pl.pallas_call(
        _conv_in_lrelu_kernel,
        out_shape=jax.ShapeDtypeStruct((B, PQ, Cout), jnp.float32),
        grid=(B,),
        in_specs=[
            pl.BlockSpec((None, PQ, Cin), lambda b: (b, 0, 0)),
            pl.BlockSpec((Cin, Cout), lambda b: (0, 0)),
        ],
        out_specs=pl.BlockSpec((None, PQ, Cout), lambda b: (b, 0, 0)),
        compiler_params=pltpu.CompilerParams(dimension_semantics=("parallel",)),
    )(x3, w)
    return out.reshape(B, P, Q, Cout)


def conv1x1_sum(xs, w):
    """Conv2d(1x1, bias=False) applied to the sum of the NHWC inputs in `xs`.

    The elementwise sum is fused into the matmul kernel (no extra HBM pass).
    xs: list of [B, H, W, Cin] f32, w: [Cin, Cout] bf16."""
    B, H, W, Cin = xs[0].shape
    Cout = w.shape[1]
    M = B * H * W
    flat = [v.reshape(M, Cin).astype(jnp.bfloat16) for v in xs]

    TM = _tile_m(M)
    Mp = _round_up(M, TM)
    if Mp != M:
        flat = [jnp.pad(v, ((0, Mp - M), (0, 0))) for v in flat]

    kernel = _make_sum_matmul_kernel(len(flat))
    out = pl.pallas_call(
        kernel,
        out_shape=jax.ShapeDtypeStruct((Mp, Cout), jnp.float32),
        grid=(Mp // TM,),
        in_specs=[pl.BlockSpec((TM, Cin), lambda i: (i, 0)) for _ in flat]
                 + [pl.BlockSpec((Cin, Cout), lambda i: (0, 0))],
        out_specs=pl.BlockSpec((TM, Cout), lambda i: (i, 0)),
        compiler_params=pltpu.CompilerParams(dimension_semantics=("parallel",)),
    )(*flat, w)
    return out[:M].reshape(B, H, W, Cout)


# ----------------------------- module forward (NHWC internally) -----------------------------

def fourier_unit_nhwc(x, w_fu):
    """FourierUnit(C, C), groups=1, ffc3d=False, fft_norm='ortho'.  x: [B,H,W,C] NHWC.

    The conv weight `w_fu` has been permuted once (prepare_params) so that the activation
    channel layout is [real_0..real_{C-1}, imag_0..imag_{C-1}] on both sides of the conv;
    the real/imag packing therefore costs one concat and one slice instead of shuffles."""
    B, H, W, C = x.shape
    # TODO(synk): 2-D rFFT/irFFT stays on XLA's FFT custom call; no Pallas FFT primitive.
    ff = jnp.fft.rfft2(x.astype(jnp.float32), axes=(1, 2), norm="ortho")   # [B,H,Wf,C] c64
    f2 = jnp.concatenate([ff.real, ff.imag], axis=-1)                      # [B,H,Wf,2C]
    z = conv1x1_in_lrelu(f2, w_fu)                                         # conv + IN + LReLU
    zc = jax.lax.complex(z[..., :C], z[..., C:])                           # [B,H,Wf,C]
    return jnp.fft.irfft2(zc, s=(H, W), axes=(1, 2), norm="ortho")          # [B,H,W,C]


def spectral_transform_forward(x_nchw, params, stride=1, enable_lfu=True):
    """SpectralTransform(in_channels, out_channels, stride, groups=1, enable_lfu).  NCHW io."""
    # single boundary transpose into NHWC (and one back at the end)
    x = jnp.transpose(x_nchw, (0, 2, 3, 1))

    if stride == 2:   # AvgPool2d(kernel_size=2, stride=2)
        B, H, W, C = x.shape
        x = x.reshape(B, H // 2, 2, W // 2, 2, C).mean(axis=(2, 4))

    # conv1: Conv2d(in, out//2, 1, bias=False) -> InstanceNorm2d -> LeakyReLU (fused kernel)
    y = conv1x1_in_lrelu(x, params["conv1_w"])            # [B, H, W, out//2]

    fu_out = fourier_unit_nhwc(y, params["fu_w"])         # [B, H, W, out//2]

    adds = [y, fu_out]
    if enable_lfu:
        B, H, W, c = y.shape
        assert H == W and c % 4 == 0, "LFU path assumes square input and c divisible by 4"
        h2 = H // 2
        xq = y[..., : c // 4]
        xs = jnp.concatenate([xq[:, :h2], xq[:, h2:]], axis=-1)        # split H, cat C
        xs = jnp.concatenate([xs[:, :, :h2], xs[:, :, h2:]], axis=-1)  # split W, cat C
        xs = fourier_unit_nhwc(xs, params["lfu_w"])                    # [B, H/2, W/2, c]
        xs = jnp.tile(xs, (1, 2, 2, 1))                                # repeat(1,1,2,2)
        adds.append(xs)

    # conv2(x + fu_out [+ lfu_out]): the sum is fused into the matmul kernel
    out = conv1x1_sum(adds, params["conv2_w"])            # [B, H, W, out]
    return jnp.transpose(out, (0, 3, 1, 2))


# ----------------------------- parameters -----------------------------

def init_torch_params(key, in_ch, out_ch):
    """Random weights in the PyTorch layout ([Cout, Cin, 1, 1]); all convs are bias-free."""
    half = out_ch // 2
    k1, k2, k3, k4 = jax.random.split(key, 4)

    def w(k, co, ci):
        return (jax.random.normal(k, (co, ci, 1, 1), jnp.float32) / np.sqrt(ci))

    return dict(
        conv1=w(k1, half, in_ch),            # Conv2d(in_ch, out_ch//2, 1, bias=False)
        fu_conv=w(k2, 2 * half, 2 * half),   # FourierUnit conv: Conv2d(out, out, 1, bias=False)
        lfu_conv=w(k3, 2 * half, 2 * half),  # LFU FourierUnit conv
        conv2=w(k4, out_ch, half),           # Conv2d(out_ch//2, out_ch, 1, bias=False)
    )


def prepare_params(tp):
    """One-time layout conversion: [Cin, Cout] bf16 matmul weights for NHWC activations.

    The FourierUnit conv's PyTorch channel order is (real_0, imag_0, real_1, imag_1, ...);
    our spectral activations use (real_0..real_{C-1}, imag_0..imag_{C-1}), so that conv's
    rows and columns are permuted here (zero runtime cost)."""
    def as_mat(w):
        return jnp.transpose(w[:, :, 0, 0], (1, 0))

    def fu_perm(w):
        c2 = w.shape[0]
        perm = jnp.concatenate([jnp.arange(0, c2, 2), jnp.arange(1, c2, 2)])
        wm = w[:, :, 0, 0][perm][:, perm]    # permute output rows and input cols
        return jnp.transpose(wm, (1, 0))

    return dict(
        conv1_w=as_mat(tp["conv1"]).astype(jnp.bfloat16),
        fu_w=fu_perm(tp["fu_conv"]).astype(jnp.bfloat16),
        lfu_w=fu_perm(tp["lfu_conv"]).astype(jnp.bfloat16),
        conv2_w=as_mat(tp["conv2"]).astype(jnp.bfloat16),
    )


# ------------------------------------ main ------------------------------------

if __name__ == "__main__":
    IN_CH, OUT_CH = 64, 64
    B, H, W = 2, 16, 16

    key = jax.random.PRNGKey(0)
    pkey, xkey = jax.random.split(key)
    tparams = init_torch_params(pkey, IN_CH, OUT_CH)
    params = prepare_params(tparams)

    x = jax.random.normal(xkey, (B, IN_CH, H, W), jnp.float32)

    fwd = jax.jit(lambda inp: spectral_transform_forward(
        inp, params, stride=1, enable_lfu=True))
    y = jax.block_until_ready(fwd(x))

    assert y.shape == (B, OUT_CH, H, W)
    assert bool(jnp.all(jnp.isfinite(y)))
    print("KERNEL_OK")
</pallas_src>

<mosaic_0001>
module attributes {stable_mosaic.version = 11 : i64} {
  func.func @_conv_in_lrelu_kernel(%arg0: i32, %arg1: memref<1x256x64xbf16, #tpu.memory_space<vmem>>, %arg2: memref<64x32xbf16, #tpu.memory_space<vmem>>, %arg3: memref<1x256x32xf32, #tpu.memory_space<vmem>>) attributes {dimension_semantics = [#tpu.dimension_semantics<parallel>], iteration_bounds = array<i64: 2>, scalar_prefetch = 0 : i64, scratch_operands = 0 : i64, tpu.core_type = #tpu.core_type<tc>, window_params = [{transform_indices = @transform_0, window_bounds = array<i64: 1, 256, 64>}, {pipeline_mode = #tpu.pipeline_mode<synchronous>, transform_indices = @transform_1, window_bounds = array<i64: 64, 32>}, {transform_indices = @transform_2, window_bounds = array<i64: 1, 256, 32>}]} {
    %c0 = arith.constant 0 : index
    %c0_0 = arith.constant 0 : index
    %c0_1 = arith.constant 0 : index
    %0 = vector.load %arg1[%c0, %c0_0, %c0_1] : memref<1x256x64xbf16, #tpu.memory_space<vmem>>, vector<1x256x64xbf16>
    %1 = vector.shape_cast %0 : vector<1x256x64xbf16> to vector<256x64xbf16>
    %c0_2 = arith.constant 0 : index
    %c0_3 = arith.constant 0 : index
    %2 = vector.load %arg2[%c0_2, %c0_3] : memref<64x32xbf16, #tpu.memory_space<vmem>>, vector<64x32xbf16>
    %cst = arith.constant dense<0.000000e+00> : vector<256x32xf32>
    %3 = tpu.matmul %1, %2, %cst {dimension_numbers = #tpu.dot_dimension_numbers<[1], [0], [0], [1], [0, 0, 1, 1], [], []>} : vector<256x64xbf16>, vector<64x32xbf16>, vector<256x32xf32> -> vector<256x32xf32>
    %cst_4 = arith.constant dense<0.000000e+00> : vector<32xf32>
    %4 = vector.multi_reduction <add>, %3, %cst_4 [0] : vector<256x32xf32> to vector<32xf32>
    %5 = vector.shape_cast %4 : vector<32xf32> to vector<1x32xf32>
    %cst_5 = arith.constant 2.560000e+02 : f32
    %6 = vector.broadcast %cst_5 : f32 to vector<1x32xf32>
    %7 = arith.divf %5, %6 : vector<1x32xf32>
    %8 = vector.broadcast %7 : vector<1x32xf32> to vector<256x32xf32>
    %9 = arith.subf %3, %8 : vector<256x32xf32>
    %10 = arith.mulf %9, %9 : vector<256x32xf32>
    %cst_6 = arith.constant dense<0.000000e+00> : vector<32xf32>
    %11 = vector.multi_reduction <add>, %10, %cst_6 [0] : vector<256x32xf32> to vector<32xf32>
    %12 = vector.shape_cast %11 : vector<32xf32> to vector<1x32xf32>
    %cst_7 = arith.constant 2.560000e+02 : f32
    %13 = vector.broadcast %cst_7 : f32 to vector<1x32xf32>
    %14 = arith.divf %12, %13 : vector<1x32xf32>
    %15 = vector.broadcast %7 : vector<1x32xf32> to vector<256x32xf32>
    %16 = arith.subf %3, %15 : vector<256x32xf32>
    %cst_8 = arith.constant 9.99999974E-6 : f32
    %17 = vector.broadcast %cst_8 : f32 to vector<1x32xf32>
    %18 = arith.addf %14, %17 : vector<1x32xf32>
    %19 = math.rsqrt %18 : vector<1x32xf32>
    %20 = vector.broadcast %19 : vector<1x32xf32> to vector<256x32xf32>
    %21 = arith.mulf %16, %20 : vector<256x32xf32>
    %cst_9 = arith.constant 0.000000e+00 : f32
    %22 = vector.broadcast %cst_9 : f32 to vector<256x32xf32>
    %23 = arith.cmpf oge, %21, %22 : vector<256x32xf32>
    %cst_10 = arith.constant 0.00999999977 : f32
    %24 = vector.broadcast %cst_10 : f32 to vector<256x32xf32>
    %25 = arith.mulf %24, %21 : vector<256x32xf32>
    %26 = arith.select %23, %21, %25 : vector<256x32xi1>, vector<256x32xf32>
    %c0_11 = arith.constant 0 : index
    %c0_12 = arith.constant 0 : index
    %c0_13 = arith.constant 0 : index
    %27 = vector.load %arg3[%c0_11, %c0_12, %c0_13] : memref<1x256x32xf32, #tpu.memory_space<vmem>>, vector<1x256x32xf32>
    %28 = vector.shape_cast %27 : vector<1x256x32xf32> to vector<256x32xf32>
    %29 = vector.shape_cast %26 : vector<256x32xf32> to vector<1x256x32xf32>
    tpu.vector_store %arg3[%c0_11, %c0_12, %c0_13], %29 {strides = array<i32>} : memref<1x256x32xf32, #tpu.memory_space<vmem>>, vector<1x256x32xf32>,
    return
  }
  func.func @transform_0(%arg0: i32) -> (i32, i32, i32) {
    %c0_i32 = arith.constant 0 : i32
    %c0_i32_0 = arith.constant 0 : i32
    %c0_i32_1 = arith.constant 0 : i32
    return %arg0, %c0_i32, %c0_i32_0 : i32, i32, i32
  }
  func.func @transform_1(%arg0: i32) -> (i32, i32) {
    %c0_i32 = arith.constant 0 : i32
    %c0_i32_0 = arith.constant 0 : i32
    %c0_i32_1 = arith.constant 0 : i32
    return %c0_i32, %c0_i32_0 : i32, i32
  }
  func.func @transform_2(%arg0: i32) -> (i32, i32, i32) {
    %c0_i32 = arith.constant 0 : i32
    %c0_i32_0 = arith.constant 0 : i32
    %c0_i32_1 = arith.constant 0 : i32
    return %arg0, %c0_i32, %c0_i32_0 : i32, i32, i32
  }
}

module attributes {stable_mosaic.version = 11 : i64} {
  func.func @_conv_in_lrelu_kernel(%arg0: i32, %arg1: memref<1x40x64xbf16, #tpu.memory_space<vmem>>, %arg2: memref<64x64xbf16, #tpu.memory_space<vmem>>, %arg3: memref<1x40x64xf32, #tpu.memory_space<vmem>>) attributes {dimension_semantics = [#tpu.dimension_semantics<parallel>], iteration_bounds = array<i64: 2>, scalar_prefetch = 0 : i64, scratch_operands = 0 : i64, tpu.core_type = #tpu.core_type<tc>, window_params = [{transform_indices = @transform_0, window_bounds = array<i64: 1, 40, 64>}, {pipeline_mode = #tpu.pipeline_mode<synchronous>, transform_indices = @transform_1, window_bounds = array<i64: 64, 64>}, {transform_indices = @transform_2, window_bounds = array<i64: 1, 40, 64>}]} {
    %c0 = arith.constant 0 : index
    %c0_0 = arith.constant 0 : index
    %c0_1 = arith.constant 0 : index
    %0 = vector.load %arg1[%c0, %c0_0, %c0_1] : memref<1x40x64xbf16, #tpu.memory_space<vmem>>, vector<1x40x64xbf16>
    %1 = vector.shape_cast %0 : vector<1x40x64xbf16> to vector<40x64xbf16>
    %c0_2 = arith.constant 0 : index
    %c0_3 = arith.constant 0 : index
    %2 = vector.load %arg2[%c0_2, %c0_3] : memref<64x64xbf16, #tpu.memory_space<vmem>>, vector<64x64xbf16>
    %cst = arith.constant dense<0.000000e+00> : vector<40x64xf32>
    %3 = tpu.matmul %1, %2, %cst {dimension_numbers = #tpu.dot_dimension_numbers<[1], [0], [0], [1], [0, 0, 1, 1], [], []>} : vector<40x64xbf16>, vector<64x64xbf16>, vector<40x64xf32> -> vector<40x64xf32>
    %cst_4 = arith.constant dense<0.000000e+00> : vector<64xf32>
    %4 = vector.multi_reduction <add>, %3, %cst_4 [0] : vector<40x64xf32> to vector<64xf32>
    %5 = vector.shape_cast %4 : vector<64xf32> to vector<1x64xf32>
    %cst_5 = arith.constant 4.000000e+01 : f32
    %6 = vector.broadcast %cst_5 : f32 to vector<1x64xf32>
    %7 = arith.divf %5, %6 : vector<1x64xf32>
    %8 = vector.broadcast %7 : vector<1x64xf32> to vector<40x64xf32>
    %9 = arith.subf %3, %8 : vector<40x64xf32>
    %10 = arith.mulf %9, %9 : vector<40x64xf32>
    %cst_6 = arith.constant dense<0.000000e+00> : vector<64xf32>
    %11 = vector.multi_reduction <add>, %10, %cst_6 [0] : vector<40x64xf32> to vector<64xf32>
    %12 = vector.shape_cast %11 : vector<64xf32> to vector<1x64xf32>
    %cst_7 = arith.constant 4.000000e+01 : f32
    %13 = vector.broadcast %cst_7 : f32 to vector<1x64xf32>
    %14 = arith.divf %12, %13 : vector<1x64xf32>
    %15 = vector.broadcast %7 : vector<1x64xf32> to vector<40x64xf32>
    %16 = arith.subf %3, %15 : vector<40x64xf32>
    %cst_8 = arith.constant 9.99999974E-6 : f32
    %17 = vector.broadcast %cst_8 : f32 to vector<1x64xf32>
    %18 = arith.addf %14, %17 : vector<1x64xf32>
    %19 = math.rsqrt %18 : vector<1x64xf32>
    %20 = vector.broadcast %19 : vector<1x64xf32> to vector<40x64xf32>
    %21 = arith.mulf %16, %20 : vector<40x64xf32>
    %cst_9 = arith.constant 0.000000e+00 : f32
    %22 = vector.broadcast %cst_9 : f32 to vector<40x64xf32>
    %23 = arith.cmpf oge, %21, %22 : vector<40x64xf32>
    %cst_10 = arith.constant 0.00999999977 : f32
    %24 = vector.broadcast %cst_10 : f32 to vector<40x64xf32>
    %25 = arith.mulf %24, %21 : vector<40x64xf32>
    %26 = arith.select %23, %21, %25 : vector<40x64xi1>, vector<40x64xf32>
    %c0_11 = arith.constant 0 : index
    %c0_12 = arith.constant 0 : index
    %c0_13 = arith.constant 0 : index
    %27 = vector.load %arg3[%c0_11, %c0_12, %c0_13] : memref<1x40x64xf32, #tpu.memory_space<vmem>>, vector<1x40x64xf32>
    %28 = vector.shape_cast %27 : vector<1x40x64xf32> to vector<40x64xf32>
    %29 = vector.shape_cast %26 : vector<40x64xf32> to vector<1x40x64xf32>
    tpu.vector_store %arg3[%c0_11, %c0_12, %c0_13], %29 {strides = array<i32>} : memref<1x40x64xf32, #tpu.memory_space<vmem>>, vector<1x40x64xf32>,
    return
  }
  func.func @transform_0(%arg0: i32) -> (i32, i32, i32) {
    %c0_i32 = arith.constant 0 : i32
    %c0_i32_0 = arith.constant 0 : i32
    %c0_i32_1 = arith.constant 0 : i32
    return %arg0, %c0_i32, %c0_i32_0 : i32, i32, i32
  }
  func.func @transform_1(%arg0: i32) -> (i32, i32) {
    %c0_i32 = arith.constant 0 : i32
    %c0_i32_0 = arith.constant 0 : i32
    %c0_i32_1 = arith.constant 0 : i32
    return %c0_i32, %c0_i32_0 : i32, i32
  }
  func.func @transform_2(%arg0: i32) -> (i32, i32, i32) {
    %c0_i32 = arith.constant 0 : i32
    %c0_i32_0 = arith.constant 0 : i32
    %c0_i32_1 = arith.constant 0 : i32
    return %arg0, %c0_i32, %c0_i32_0 : i32, i32, i32
  }
}

module attributes {stable_mosaic.version = 11 : i64} {
  func.func @_conv_in_lrelu_kernel(%arg0: i32, %arg1: memref<1x144x64xbf16, #tpu.memory_space<vmem>>, %arg2: memref<64x64xbf16, #tpu.memory_space<vmem>>, %arg3: memref<1x144x64xf32, #tpu.memory_space<vmem>>) attributes {dimension_semantics = [#tpu.dimension_semantics<parallel>], iteration_bounds = array<i64: 2>, scalar_prefetch = 0 : i64, scratch_operands = 0 : i64, tpu.core_type = #tpu.core_type<tc>, window_params = [{transform_indices = @transform_0, window_bounds = array<i64: 1, 144, 64>}, {pipeline_mode = #tpu.pipeline_mode<synchronous>, transform_indices = @transform_1, window_bounds = array<i64: 64, 64>}, {transform_indices = @transform_2, window_bounds = array<i64: 1, 144, 64>}]} {
    %c0 = arith.constant 0 : index
    %c0_0 = arith.constant 0 : index
    %c0_1 = arith.constant 0 : index
    %0 = vector.load %arg1[%c0, %c0_0, %c0_1] : memref<1x144x64xbf16, #tpu.memory_space<vmem>>, vector<1x144x64xbf16>
    %1 = vector.shape_cast %0 : vector<1x144x64xbf16> to vector<144x64xbf16>
    %c0_2 = arith.constant 0 : index
    %c0_3 = arith.constant 0 : index
    %2 = vector.load %arg2[%c0_2, %c0_3] : memref<64x64xbf16, #tpu.memory_space<vmem>>, vector<64x64xbf16>
    %cst = arith.constant dense<0.000000e+00> : vector<144x64xf32>
    %3 = tpu.matmul %1, %2, %cst {dimension_numbers = #tpu.dot_dimension_numbers<[1], [0], [0], [1], [0, 0, 1, 1], [], []>} : vector<144x64xbf16>, vector<64x64xbf16>, vector<144x64xf32> -> vector<144x64xf32>
    %cst_4 = arith.constant dense<0.000000e+00> : vector<64xf32>
    %4 = vector.multi_reduction <add>, %3, %cst_4 [0] : vector<144x64xf32> to vector<64xf32>
    %5 = vector.shape_cast %4 : vector<64xf32> to vector<1x64xf32>
    %cst_5 = arith.constant 1.440000e+02 : f32
    %6 = vector.broadcast %cst_5 : f32 to vector<1x64xf32>
    %7 = arith.divf %5, %6 : vector<1x64xf32>
    %8 = vector.broadcast %7 : vector<1x64xf32> to vector<144x64xf32>
    %9 = arith.subf %3, %8 : vector<144x64xf32>
    %10 = arith.mulf %9, %9 : vector<144x64xf32>
    %cst_6 = arith.constant dense<0.000000e+00> : vector<64xf32>
    %11 = vector.multi_reduction <add>, %10, %cst_6 [0] : vector<144x64xf32> to vector<64xf32>
    %12 = vector.shape_cast %11 : vector<64xf32> to vector<1x64xf32>
    %cst_7 = arith.constant 1.440000e+02 : f32
    %13 = vector.broadcast %cst_7 : f32 to vector<1x64xf32>
    %14 = arith.divf %12, %13 : vector<1x64xf32>
    %15 = vector.broadcast %7 : vector<1x64xf32> to vector<144x64xf32>
    %16 = arith.subf %3, %15 : vector<144x64xf32>
    %cst_8 = arith.constant 9.99999974E-6 : f32
    %17 = vector.broadcast %cst_8 : f32 to vector<1x64xf32>
    %18 = arith.addf %14, %17 : vector<1x64xf32>
    %19 = math.rsqrt %18 : vector<1x64xf32>
    %20 = vector.broadcast %19 : vector<1x64xf32> to vector<144x64xf32>
    %21 = arith.mulf %16, %20 : vector<144x64xf32>
    %cst_9 = arith.constant 0.000000e+00 : f32
    %22 = vector.broadcast %cst_9 : f32 to vector<144x64xf32>
    %23 = arith.cmpf oge, %21, %22 : vector<144x64xf32>
    %cst_10 = arith.constant 0.00999999977 : f32
    %24 = vector.broadcast %cst_10 : f32 to vector<144x64xf32>
    %25 = arith.mulf %24, %21 : vector<144x64xf32>
    %26 = arith.select %23, %21, %25 : vector<144x64xi1>, vector<144x64xf32>
    %c0_11 = arith.constant 0 : index
    %c0_12 = arith.constant 0 : index
    %c0_13 = arith.constant 0 : index
    %27 = vector.load %arg3[%c0_11, %c0_12, %c0_13] : memref<1x144x64xf32, #tpu.memory_space<vmem>>, vector<1x144x64xf32>
    %28 = vector.shape_cast %27 : vector<1x144x64xf32> to vector<144x64xf32>
    %29 = vector.shape_cast %26 : vector<144x64xf32> to vector<1x144x64xf32>
    tpu.vector_store %arg3[%c0_11, %c0_12, %c0_13], %29 {strides = array<i32>} : memref<1x144x64xf32, #tpu.memory_space<vmem>>, vector<1x144x64xf32>,
    return
  }
  func.func @transform_0(%arg0: i32) -> (i32, i32, i32) {
    %c0_i32 = arith.constant 0 : i32
    %c0_i32_0 = arith.constant 0 : i32
    %c0_i32_1 = arith.constant 0 : i32
    return %arg0, %c0_i32, %c0_i32_0 : i32, i32, i32
  }
  func.func @transform_1(%arg0: i32) -> (i32, i32) {
    %c0_i32 = arith.constant 0 : i32
    %c0_i32_0 = arith.constant 0 : i32
    %c0_i32_1 = arith.constant 0 : i32
    return %c0_i32, %c0_i32_0 : i32, i32
  }
  func.func @transform_2(%arg0: i32) -> (i32, i32, i32) {
    %c0_i32 = arith.constant 0 : i32
    %c0_i32_0 = arith.constant 0 : i32
    %c0_i32_1 = arith.constant 0 : i32
    return %arg0, %c0_i32, %c0_i32_0 : i32, i32, i32
  }
}

module attributes {stable_mosaic.version = 11 : i64} {
  func.func @kernel(%arg0: i32, %arg1: memref<256x32xbf16, #tpu.memory_space<vmem>>, %arg2: memref<256x32xbf16, #tpu.memory_space<vmem>>, %arg3: memref<256x32xbf16, #tpu.memory_space<vmem>>, %arg4: memref<32x64xbf16, #tpu.memory_space<vmem>>, %arg5: memref<256x64xf32, #tpu.memory_space<vmem>>) attributes {dimension_semantics = [#tpu.dimension_semantics<parallel>], iteration_bounds = array<i64: 2>, scalar_prefetch = 0 : i64, scratch_operands = 0 : i64, tpu.core_type = #tpu.core_type<tc>, window_params = [{transform_indices = @transform_0, window_bounds = array<i64: 256, 32>}, {transform_indices = @transform_1, window_bounds = array<i64: 256, 32>}, {transform_indices = @transform_2, window_bounds = array<i64: 256, 32>}, {pipeline_mode = #tpu.pipeline_mode<synchronous>, transform_indices = @transform_3, window_bounds = array<i64: 32, 64>}, {transform_indices = @transform_4, window_bounds = array<i64: 256, 64>}]} {
    %c0 = arith.constant 0 : index
    %c0_0 = arith.constant 0 : index
    %0 = vector.load %arg1[%c0, %c0_0] : memref<256x32xbf16, #tpu.memory_space<vmem>>, vector<256x32xbf16>
    %1 = arith.extf %0 : vector<256x32xbf16> to vector<256x32xf32>
    %c0_1 = arith.constant 0 : index
    %c0_2 = arith.constant 0 : index
    %2 = vector.load %arg2[%c0_1, %c0_2] : memref<256x32xbf16, #tpu.memory_space<vmem>>, vector<256x32xbf16>
    %3 = arith.extf %2 : vector<256x32xbf16> to vector<256x32xf32>
    %4 = arith.addf %1, %3 : vector<256x32xf32>
    %c0_3 = arith.constant 0 : index
    %c0_4 = arith.constant 0 : index
    %5 = vector.load %arg3[%c0_3, %c0_4] : memref<256x32xbf16, #tpu.memory_space<vmem>>, vector<256x32xbf16>
    %6 = arith.extf %5 : vector<256x32xbf16> to vector<256x32xf32>
    %7 = arith.addf %4, %6 : vector<256x32xf32>
    %8 = arith.truncf %7 : vector<256x32xf32> to vector<256x32xbf16>
    %c0_5 = arith.constant 0 : index
    %c0_6 = arith.constant 0 : index
    %9 = vector.load %arg4[%c0_5, %c0_6] : memref<32x64xbf16, #tpu.memory_space<vmem>>, vector<32x64xbf16>
    %cst = arith.constant dense<0.000000e+00> : vector<256x64xf32>
    %10 = tpu.matmul %8, %9, %cst {dimension_numbers = #tpu.dot_dimension_numbers<[1], [0], [0], [1], [0, 0, 1, 1], [], []>} : vector<256x32xbf16>, vector<32x64xbf16>, vector<256x64xf32> -> vector<256x64xf32>
    %c0_7 = arith.constant 0 : index
    %c0_8 = arith.constant 0 : index
    %11 = vector.load %arg5[%c0_7, %c0_8] : memref<256x64xf32, #tpu.memory_space<vmem>>, vector<256x64xf32>
    tpu.vector_store %arg5[%c0_7, %c0_8], %10 {strides = array<i32>} : memref<256x64xf32, #tpu.memory_space<vmem>>, vector<256x64xf32>,
    return
  }
  func.func @transform_0(%arg0: i32) -> (i32, i32) {
    %c0_i32 = arith.constant 0 : i32
    %c0_i32_0 = arith.constant 0 : i32
    return %arg0, %c0_i32 : i32, i32
  }
  func.func @transform_1(%arg0: i32) -> (i32, i32) {
    %c0_i32 = arith.constant 0 : i32
    %c0_i32_0 = arith.constant 0 : i32
    return %arg0, %c0_i32 : i32, i32
  }
  func.func @transform_2(%arg0: i32) -> (i32, i32) {
    %c0_i32 = arith.constant 0 : i32
    %c0_i32_0 = arith.constant 0 : i32
    return %arg0, %c0_i32 : i32, i32
  }
  func.func @transform_3(%arg0: i32) -> (i32, i32) {
    %c0_i32 = arith.constant 0 : i32
    %c0_i32_0 = arith.constant 0 : i32
    %c0_i32_1 = arith.constant 0 : i32
    return %c0_i32, %c0_i32_0 : i32, i32
  }
  func.func @transform_4(%arg0: i32) -> (i32, i32) {
    %c0_i32 = arith.constant 0 : i32
    %c0_i32_0 = arith.constant 0 : i32
    return %arg0, %c0_i32 : i32, i32
  }
}

</mosaic_0001>

<llo_original>
// kernel: _lambda_.4
$region0: #{_lambda_.4}
  #allocation0 [shape = 'u32[]', space=smem, size = 0x4, offset = 0x4, fixed_abs, tag = 'smem constant byte address 0x4 - core index']
  #allocation1 [shape = 'u32[72,128]{1,0:T(1,128)}', space=vmem, size = 0x9000, scoped, tag = 'internal scratch']
  %s0 = inlined_call_operand.vmem [shape: bf16[2,256,64], index: 0, kind: input, shape index: {}]
  %s1 = inlined_call_operand.vmem [shape: bf16[64,32], index: 1, kind: input, shape index: {}]
  %s2 = inlined_call_operand.vmem [shape: f32[2,256,32], index: 2, kind: output, shape index: {}]
  %s3 = sld [smem:[#allocation0]]
  $region41: #{_lambda_.4} parent=0
    _
  %s5 = ssub.s32 1, %s3
  %s6 = scalar_select 0, %s5, %s3
  loop: start=0, step=1, limit=4
  $region2: #{_lambda_.4} parent=0 // loop_pre_header
    _
  $region3: #{_lambda_.4} parent=0 // loop_header
    %s8 = sphi 0, %s12
    %p9 = scmp.ge.s32.totalorder %s8, 4
    %s18 = sphi 0, %s20
    %s21 = sphi 0, %s18
    %s22 = sphi 0, %s21
    %s38 = sphi 0, %s22
    %s42 = sphi 0, %s42
    %s44 = sphi 0, %s42
    %s45 = sphi 0, %s44
    %s59 = sphi 0, %s45
    %s65 = sphi 0, %s67
    %s68 = sphi 0, %s65
    %s69 = sphi 0, %s68
    %s85 = sphi 0, %s69
  $region4: #{_lambda_.4} parent=0 // loop_header_branch
    %11 = sbr.rel (%p9) target = $region8
  $region5: #{_lambda_.4} parent=0 // loop_body
    %s13 = ssub.s32 %s8, 1
    %s14 = ssub.s32 %s8, 2
    %s15 = sadd.s32 %s8, 1
    %s16 = ssub.s32 %s8, %s15
    %p17 = scmp.eq.s32.totalorder %s16, 0
    %s19 = sadd.s32 %s18, 1
    %s20 = scalar_select %p17, %s18, %s19
    %p23 = pneg %p17
    %p24 = scmp.eq.s32.totalorder %s8, 1
    %p25 = por %p23, %p24
    %p26 = scmp.ne.s32.totalorder %s18, %s21
    %p27 = scmp.eq.s32.totalorder %s8, 0
    %p28 = por %p26, %p27
    %p29 = scmp.ne.s32.totalorder %s18, %s21
    %p30 = scmp.eq.s32.totalorder %s13, 1
    %p31 = por %p29, %p30
    %p32 = scmp.ne.s32.totalorder %s21, %s22
    %p33 = scmp.eq.s32.totalorder %s13, 0
    %p34 = por %p32, %p33
    %p35 = scmp.ne.s32.totalorder %s21, %s22
    %p36 = scmp.eq.s32.totalorder %s14, 1
    %p37 = por %p35, %p36
    %p39 = scmp.ne.s32.totalorder %s22, %s38
    %p40 = scmp.eq.s32.totalorder %s14, 0
    %p41 = por %p39, %p40
    %s43 = sadd.s32 %s42, 1
    %p46 = scmp.eq.s32.totalorder %s8, 1
    %p47 = scmp.ne.s32.totalorder %s42, %s44
    %p48 = scmp.eq.s32.totalorder %s8, 0
    %p49 = por %p47, %p48
    %p50 = scmp.ne.s32.totalorder %s42, %s44
    %p51 = scmp.eq.s32.totalorder %s13, 1
    %p52 = por %p50, %p51
    %p53 = scmp.ne.s32.totalorder %s44, %s45
    %p54 = scmp.eq.s32.totalorder %s13, 0
    %p55 = por %p53, %p54
    %p56 = scmp.ne.s32.totalorder %s44, %s45
    %p57 = scmp.eq.s32.totalorder %s14, 1
    %p58 = por %p56, %p57
    %p60 = scmp.ne.s32.totalorder %s45, %s59
    %p61 = scmp.eq.s32.totalorder %s14, 0
    %p62 = por %p60, %p61
    %s63 = ssub.s32 %s8, %s15
    %p64 = scmp.eq.s32.totalorder %s63, 0
    %s66 = sadd.s32 %s65, 1
    %s67 = scalar_select %p64, %s65, %s66
    %p70 = pneg %p64
    %p71 = scmp.eq.s32.totalorder %s8, 1
    %p72 = por %p70, %p71
    %p73 = scmp.ne.s32.totalorder %s65, %s68
    %p74 = scmp.eq.s32.totalorder %s8, 0
    %p75 = por %p73, %p74
    %p76 = scmp.ne.s32.totalorder %s65, %s68
    %p77 = scmp.eq.s32.totalorder %s13, 1
    %p78 = por %p76, %p77
    %p79 = scmp.ne.s32.totalorder %s68, %s69
    %p80 = scmp.eq.s32.totalorder %s13, 0
    %p81 = por %p79, %p80
    %p82 = scmp.ne.s32.totalorder %s68, %s69
    %p83 = scmp.eq.s32.totalorder %s14, 1
    %p84 = por %p82, %p83
    %p86 = scmp.ne.s32.totalorder %s69, %s85
    %p87 = scmp.eq.s32.totalorder %s14, 0
    %p88 = por %p86, %p87
    %p89 = scmp.le.s32.totalorder 1, %s8
    %p90 = scmp.lt.s32.totalorder %s8, 3
    %p91 = pnand %p89, %p90
    %p92 = pneg %p91
    // Predicated region
    $region9: #{_lambda_.4} parent=5 // pred_check
      _
    $region10: #{_lambda_.4} parent=5 // pred_check_branch
      %94 = sbr.rel (%p91) target = $region12
    $region11: #{_lambda_.4} parent=5 // pred_region
      %s95 = ssub.s32 %s8, 1
      // Predicated region
      $region13: #{_lambda_.4} parent=11 // pred_check
        %p96 = pneg %p55
      $region14: #{_lambda_.4} parent=11 // pred_check_branch
        %98 = sbr.rel (%p96) target = $region16
      $region15: #{_lambda_.4} parent=11 // pred_region
        _
      $region16: #{_lambda_.4} parent=11 // pred_fallthru
        _
    $region12: #{_lambda_.4} parent=5 // pred_fallthru
      _
    %p99 = scmp.lt.s32.totalorder %s8, 2
    // Predicated region
    $region17: #{_lambda_.4} parent=5 // pred_check
      %p100 = pneg %p99
    $region18: #{_lambda_.4} parent=5 // pred_check_branch
      %102 = sbr.rel (%p100) target = $region20
    $region19: #{_lambda_.4} parent=5 // pred_region
      // Predicated region
      $region21: #{_lambda_.4} parent=19 // pred_check
        %p103 = pneg %p28
      $region22: #{_lambda_.4} parent=19 // pred_check_branch
        %105 = sbr.rel (%p103) target = $region24
      $region23: #{_lambda_.4} parent=19 // pred_region
        %p106 = scmp.lt.s32.totalorder %s8, 1
        %s107 = scalar_select %p106, %s8, 1
        %s108 = smul.addr %s107, 32
        %s109 = smul.addr %s108, 4
        %s110 = scalar_lea.vmem %s0, %s109
      $region24: #{_lambda_.4} parent=19 // pred_fallthru
        _
    $region20: #{_lambda_.4} parent=5 // pred_fallthru
      _
    %p111 = scmp.le.s32.totalorder 1, %s8
    %p112 = scmp.lt.s32.totalorder %s8, 3
    %p113 = pnand %p111, %p112
    %p114 = pneg %p113
    // Predicated region
    $region25: #{_lambda_.4} parent=5 // pred_check
      _
    $region26: #{_lambda_.4} parent=5 // pred_check_branch
      %116 = sbr.rel (%p113) target = $region28
    $region27: #{_lambda_.4} parent=5 // pred_region
      %s117 = ssub.s32 %s8, 1
      %p118 = scmp.lt.s32.totalorder %s13, 1
      %s119 = scalar_select %p118, %s13, 1
      %s120 = smul.addr %s119, 32
      %s121 = smul.addr %s120, 4
      %s122 = scalar_lea.vmem %s0, %s121
      %p123 = pneg %p34
      %p124 = pneg %p31
      %p125 = pneg %p55
      %p126 = pneg %p52
      %p127 = pneg %p81
      %p128 = pneg %p78
      %p129 = scmp.lt.s32.totalorder %s13, 1
      %s130 = scalar_select %p129, %s13, 1
      %s131 = smul.addr %s130, 32
      %s132 = smul.addr %s131, 8
      %s133 = scalar_lea.vmem %s2, %s132
      %p134 = scmp.lt.s32.totalorder %s13, 1
      %s135 = scalar_select %p134, %s13, 1
      %s136 = smul.addr %s135, 32
      %s137 = smul.addr %s136, 4
      %s138 = scalar_lea.vmem %s0, %s137
      %p139 = scmp.lt.s32.totalorder %s13, 1
      %s140 = scalar_select %p139, %s13, 1
      %s141 = smul.addr %s140, 32
      %s142 = smul.addr %s141, 8
      %s143 = scalar_lea.vmem %s2, %s142
      %v145 = vld [vmem:[%s138] sm:$0xf]
      %v146 = vld [vmem:[%s138 + $0x4] sm:$0xf]
      %v147 = vld [vmem:[%s138 + $0x8] sm:$0xf]
      %v148 = vld [vmem:[%s138 + $0xc] sm:$0xf]
      %v149 = vld [vmem:[%s138 + $0x10] sm:$0xf]
      %v150 = vld [vmem:[%s138 + $0x14] sm:$0xf]
      %v151 = vld [vmem:[%s138 + $0x18] sm:$0xf]
      %v152 = vld [vmem:[%s138 + $0x1c] sm:$0xf]
      %v153 = vld [vmem:[%s138 + $0x20] sm:$0xf]
      %v154 = vld [vmem:[%s138 + $0x24] sm:$0xf]
      %v155 = vld [vmem:[%s138 + $0x28] sm:$0xf]
      %v156 = vld [vmem:[%s138 + $0x2c] sm:$0xf]
      %v157 = vld [vmem:[%s138 + $0x30] sm:$0xf]
      %v158 = vld [vmem:[%s138 + $0x34] sm:$0xf]
      %v159 = vld [vmem:[%s138 + $0x38] sm:$0xf]
      %v160 = vld [vmem:[%s138 + $0x3c] sm:$0xf]
      %v161 = vld [vmem:[%s138 + $0x40] sm:$0xf]
      %v162 = vld [vmem:[%s138 + $0x44] sm:$0xf]
      %v163 = vld [vmem:[%s138 + $0x48] sm:$0xf]
      %v164 = vld [vmem:[%s138 + $0x4c] sm:$0xf]
      %v165 = vld [vmem:[%s138 + $0x50] sm:$0xf]
      %v166 = vld [vmem:[%s138 + $0x54] sm:$0xf]
      %v167 = vld [vmem:[%s138 + $0x58] sm:$0xf]
      %v168 = vld [vmem:[%s138 + $0x5c] sm:$0xf]
      %v169 = vld [vmem:[%s138 + $0x60] sm:$0xf]
      %v170 = vld [vmem:[%s138 + $0x64] sm:$0xf]
      %v171 = vld [vmem:[%s138 + $0x68] sm:$0xf]
      %v172 = vld [vmem:[%s138 + $0x6c] sm:$0xf]
      %v173 = vld [vmem:[%s138 + $0x70] sm:$0xf]
      %v174 = vld [vmem:[%s138 + $0x74] sm:$0xf]
      %v175 = vld [vmem:[%s138 + $0x78] sm:$0xf]
      %v176 = vld [vmem:[%s138 + $0x7c] sm:$0xf]
      %v177 = vld [vmem:[%s1] sm:$0xf]
      %v178 = vld [vmem:[%s1 + $0x4] sm:$0xf]
      %v179 = vld [vmem:[%s1 + $0x8] sm:$0xf]
      %v180 = vld [vmem:[%s1 + $0xc] sm:$0xf]
      %v181 = vld [vmem:[%s1 + $0x10] sm:$0xf]
      %v182 = vld [vmem:[%s1 + $0x14] sm:$0xf]
      %v183 = vld [vmem:[%s1 + $0x18] sm:$0xf]
      %v184 = vld [vmem:[%s1 + $0x1c] sm:$0xf]
      %v217 = vunpack.c.l.b16 %v145
      %v218 = vunpack.c.l.b16 %v146
      %v219 = vunpack.c.l.b16 %v147
      %v220 = vunpack.c.l.b16 %v148
      %v221 = vunpack.c.l.b16 %v149
      %v222 = vunpack.c.l.b16 %v150
      %v223 = vunpack.c.l.b16 %v151
      %v224 = vunpack.c.l.b16 %v152
      %v225 = vunpack.c.l.b16 %v153
      %v226 = vunpack.c.l.b16 %v154
      %v227 = vunpack.c.l.b16 %v155
      %v228 = vunpack.c.l.b16 %v156
      %v229 = vunpack.c.l.b16 %v157
      %v230 = vunpack.c.l.b16 %v158
      %v231 = vunpack.c.l.b16 %v159
      %v232 = vunpack.c.l.b16 %v160
      %v233 = vunpack.c.l.b16 %v161
      %v234 = vunpack.c.l.b16 %v162
      %v235 = vunpack.c.l.b16 %v163
      %v236 = vunpack.c.l.b16 %v164
      %v237 = vunpack.c.l.b16 %v165
      %v238 = vunpack.c.l.b16 %v166
      %v239 = vunpack.c.l.b16 %v167
      %v240 = vunpack.c.l.b16 %v168
      %v241 = vunpack.c.l.b16 %v169
      %v242 = vunpack.c.l.b16 %v170
      %v243 = vunpack.c.l.b16 %v171
      %v244 = vunpack.c.l.b16 %v172
      %v245 = vunpack.c.l.b16 %v173
      %v246 = vunpack.c.l.b16 %v174
      %v247 = vunpack.c.l.b16 %v175
      %v248 = vunpack.c.l.b16 %v176
      %v249 = vpack.c.b16 %v218, %v217
      %v250 = vpack.c.b16 %v220, %v219
      %v251 = vpack.c.b16 %v222, %v221
      %v252 = vpack.c.b16 %v224, %v223
      %v253 = vpack.c.b16 %v226, %v225
      %v254 = vpack.c.b16 %v228, %v227
      %v255 = vpack.c.b16 %v230, %v229
      %v256 = vpack.c.b16 %v232, %v231
      %v257 = vpack.c.b16 %v234, %v233
      %v258 = vpack.c.b16 %v236, %v235
      %v259 = vpack.c.b16 %v238, %v237
      %v260 = vpack.c.b16 %v240, %v239
      %v261 = vpack.c.b16 %v242, %v241
      %v262 = vpack.c.b16 %v244, %v243
      %v263 = vpack.c.b16 %v246, %v245
      %v264 = vpack.c.b16 %v248, %v247
      %v273 = vunpack.c.l.b16 %v177
      %v274 = vunpack.c.l.b16 %v178
      %v275 = vunpack.c.l.b16 %v179
      %v276 = vunpack.c.l.b16 %v180
      %v277 = vunpack.c.l.b16 %v181
      %v278 = vunpack.c.l.b16 %v182
      %v279 = vunpack.c.l.b16 %v183
      %v280 = vunpack.c.l.b16 %v184
      %v281 = vpack.c.b16 %v274, %v273
      %v282 = vpack.c.b16 %v276, %v275
      %v283 = vpack.c.b16 %v278, %v277
      %v284 = vpack.c.b16 %v280, %v279
      %vm289 = vcmask 523264
      %v291 = vsel %vm289, %v249, 0
      %v294 = vsel %vm289, %v250, 0
      %v297 = vsel %vm289, %v251, 0
      %v300 = vsel %vm289, %v252, 0
      %v303 = vsel %vm289, %v253, 0
      %v306 = vsel %vm289, %v254, 0
      %v309 = vsel %vm289, %v255, 0
      %v312 = vsel %vm289, %v256, 0
      %v315 = vsel %vm289, %v257, 0
      %v318 = vsel %vm289, %v258, 0
      %v321 = vsel %vm289, %v259, 0
      %v324 = vsel %vm289, %v260, 0
      %v327 = vsel %vm289, %v261, 0
      %v330 = vsel %vm289, %v262, 0
      %v333 = vsel %vm289, %v263, 0
      %v336 = vsel %vm289, %v264, 0
      %338 = vmatpush.bf16.msra.mxu0 0
      %339 = vmatpush.bf16.msra.mxu0 0
      %340 = vmatpush.bf16.msra.mxu0 0
      %341 = vmatpush.bf16.msra.mxu0 0
      %342 = vmatpush.bf16.msra.mxu0 %v284
      %343 = vmatpush.bf16.msra.mxu0 %v283
      %344 = vmatpush.bf16.msra.mxu0 %v282
      %345 = vmatpush.bf16.msra.mxu0 %v281
      %346 = vmatmul.bf16.gmra.mxu0 %v291
      %v347 = vpop.f32.mrf.mxu0
      %v348 = vadd.f32 0.0, %v347
      %v349 = vpop.f32.mrf.mxu0
      %v350 = vadd.f32 0.0, %v349
      %351 = vmatmul.bf16.gmra.mxu0 %v294
      %v352 = vpop.f32.mrf.mxu0
      %v353 = vadd.f32 0.0, %v352
      %v354 = vpop.f32.mrf.mxu0
      %v355 = vadd.f32 0.0, %v354
      %356 = vmatmul.bf16.gmra.mxu0 %v297
      %v357 = vpop.f32.mrf.mxu0
      %v358 = vadd.f32 0.0, %v357
      %v359 = vpop.f32.mrf.mxu0
      %v360 = vadd.f32 0.0, %v359
      %361 = vmatmul.bf16.gmra.mxu0 %v300
      %v362 = vpop.f32.mrf.mxu0
      %v363 = vadd.f32 0.0, %v362
      %v364 = vpop.f32.mrf.mxu0
      %v365 = vadd.f32 0.0, %v364
      %366 = vmatmul.bf16.gmra.mxu0 %v303
      %v367 = vpop.f32.mrf.mxu0
      %v368 = vadd.f32 0.0, %v367
      %v369 = vpop.f32.mrf.mxu0
      %v370 = vadd.f32 0.0, %v369
      %371 = vmatmul.bf16.gmra.mxu0 %v306
      %v372 = vpop.f32.mrf.mxu0
      %v373 = vadd.f32 0.0, %v372
      %v374 = vpop.f32.mrf.mxu0
      %v375 = vadd.f32 0.0, %v374
      %376 = vmatmul.bf16.gmra.mxu0 %v309
      %v377 = vpop.f32.mrf.mxu0
      %v378 = vadd.f32 0.0, %v377
      %v379 = vpop.f32.mrf.mxu0
      %v380 = vadd.f32 0.0, %v379
      %381 = vmatmul.bf16.gmra.mxu0 %v312
      %v382 = vpop.f32.mrf.mxu0
      %v383 = vadd.f32 0.0, %v382
      %v384 = vpop.f32.mrf.mxu0
      %v385 = vadd.f32 0.0, %v384
      %386 = vmatmul.bf16.gmra.mxu0 %v315
      %v387 = vpop.f32.mrf.mxu0
      %v388 = vadd.f32 0.0, %v387
      %v389 = vpop.f32.mrf.mxu0
      %v390 = vadd.f32 0.0, %v389
      %391 = vmatmul.bf16.gmra.mxu0 %v318
      %v392 = vpop.f32.mrf.mxu0
      %v393 = vadd.f32 0.0, %v392
      %v394 = vpop.f32.mrf.mxu0
      %v395 = vadd.f32 0.0, %v394
      %396 = vmatmul.bf16.gmra.mxu0 %v321
      %v397 = vpop.f32.mrf.mxu0
      %v398 = vadd.f32 0.0, %v397
      %v399 = vpop.f32.mrf.mxu0
      %v400 = vadd.f32 0.0, %v399
      %401 = vmatmul.bf16.gmra.mxu0 %v324
      %v402 = vpop.f32.mrf.mxu0
      %v403 = vadd.f32 0.0, %v402
      %v404 = vpop.f32.mrf.mxu0
      %v405 = vadd.f32 0.0, %v404
      %406 = vmatmul.bf16.gmra.mxu0 %v327
      %v407 = vpop.f32.mrf.mxu0
      %v408 = vadd.f32 0.0, %v407
      %v409 = vpop.f32.mrf.mxu0
      %v410 = vadd.f32 0.0, %v409
      %411 = vmatmul.bf16.gmra.mxu0 %v330
      %v412 = vpop.f32.mrf.mxu0
      %v413 = vadd.f32 0.0, %v412
      %v414 = vpop.f32.mrf.mxu0
      %v415 = vadd.f32 0.0, %v414
      %416 = vmatmul.bf16.gmra.mxu0 %v333
      %v417 = vpop.f32.mrf.mxu0
      %v418 = vadd.f32 0.0, %v417
      %v419 = vpop.f32.mrf.mxu0
      %v420 = vadd.f32 0.0, %v419
      %421 = vmatmul.bf16.gmra.mxu0 %v336
      %v422 = vpop.f32.mrf.mxu0
      %v423 = vadd.f32 0.0, %v422
      %v424 = vpop.f32.mrf.mxu0
      %v425 = vadd.f32 0.0, %v424
      %426 = vdwg.mxu0
      %vm427 = vcmask 261120
      %v428 = vsel %vm427, %v348, 0.0
      %v429 = vsel %vm427, %v350, 0.0
      %v430 = vadd.f32 %v428, %v429
      %v431 = vsel %vm427, %v353, 0.0
      %v432 = vadd.f32 %v430, %v431
      %v433 = vsel %vm427, %v355, 0.0
      %v434 = vadd.f32 %v432, %v433
      %v435 = vsel %vm427, %v358, 0.0
      %v436 = vadd.f32 %v434, %v435
      %v437 = vsel %vm427, %v360, 0.0
      %v438 = vadd.f32 %v436, %v437
      %v439 = vsel %vm427, %v363, 0.0
      %v440 = vadd.f32 %v438, %v439
      %v441 = vsel %vm427, %v365, 0.0
      %v442 = vadd.f32 %v440, %v441
      %v443 = vsel %vm427, %v368, 0.0
      %v444 = vadd.f32 %v442, %v443
      %v445 = vsel %vm427, %v370, 0.0
      %v446 = vadd.f32 %v444, %v445
      %v447 = vsel %vm427, %v373, 0.0
      %v448 = vadd.f32 %v446, %v447
      %v449 = vsel %vm427, %v375, 0.0
      %v450 = vadd.f32 %v448, %v449
      %v451 = vsel %vm427, %v378, 0.0
      %v452 = vadd.f32 %v450, %v451
      %v453 = vsel %vm427, %v380, 0.0
      %v454 = vadd.f32 %v452, %v453
      %v455 = vsel %vm427, %v383, 0.0
      %v456 = vadd.f32 %v454, %v455
      %v457 = vsel %vm427, %v385, 0.0
      %v458 = vadd.f32 %v456, %v457
      %v459 = vsel %vm427, %v388, 0.0
      %v460 = vadd.f32 %v458, %v459
      %v461 = vsel %vm427, %v390, 0.0
      %v462 = vadd.f32 %v460, %v461
      %v463 = vsel %vm427, %v393, 0.0
      %v464 = vadd.f32 %v462, %v463
      %v465 = vsel %vm427, %v395, 0.0
      %v466 = vadd.f32 %v464, %v465
      %v467 = vsel %vm427, %v398, 0.0
      %v468 = vadd.f32 %v466, %v467
      %v469 = vsel %vm427, %v400, 0.0
      %v470 = vadd.f32 %v468, %v469
      %v471 = vsel %vm427, %v403, 0.0
      %v472 = vadd.f32 %v470, %v471
      %v473 = vsel %vm427, %v405, 0.0
      %v474 = vadd.f32 %v472, %v473
      %v475 = vsel %vm427, %v408, 0.0
      %v476 = vadd.f32 %v474, %v475
      %v477 = vsel %vm427, %v410, 0.0
      %v478 = vadd.f32 %v476, %v477
      %v479 = vsel %vm427, %v413, 0.0
      %v480 = vadd.f32 %v478, %v479
      %v481 = vsel %vm427, %v415, 0.0
      %v482 = vadd.f32 %v480, %v481
      %v483 = vsel %vm427, %v418, 0.0
      %v484 = vadd.f32 %v482, %v483
      %v485 = vsel %vm427, %v420, 0.0
      %v486 = vadd.f32 %v484, %v485
      %v487 = vsel %vm427, %v423, 0.0
      %v488 = vadd.f32 %v486, %v487
      %v489 = vsel %vm427, %v425, 0.0
      %v490 = vadd.f32 %v488, %v489
      %v491 = vrot.slane %v490, 4
      %v492 = vadd.f32 %v490, %v491
      %v493 = vrot.slane %v492, 2
      %v494 = vadd.f32 %v492, %v493
      %v495 = vrot.slane %v494, 1
      %v496 = vadd.f32 %v494, %v495
      %v497 = vrcp.pop 256.0
      %v498 = vmul.f32 256.0, %v497
      %v499 = vsub.f32 1.0, %v498
      %v500 = vmul.f32 %v497, %v499
      %v501 = vadd.f32 %v497, %v500
      %vm502 = vweird.f32 %v497
      %v503 = vsel %vm502, %v497, %v501
      %v504 = vmul.f32 %v496, %v503
      %v505 = vsub.f32 %v348, %v504
      %v506 = vsub.f32 %v350, %v504
      %v507 = vsub.f32 %v353, %v504
      %v508 = vsub.f32 %v355, %v504
      %v509 = vsub.f32 %v358, %v504
      %v510 = vsub.f32 %v360, %v504
      %v511 = vsub.f32 %v363, %v504
      %v512 = vsub.f32 %v365, %v504
      %v513 = vsub.f32 %v368, %v504
      %v514 = vsub.f32 %v370, %v504
      %v515 = vsub.f32 %v373, %v504
      %v516 = vsub.f32 %v375, %v504
      %v517 = vsub.f32 %v378, %v504
      %v518 = vsub.f32 %v380, %v504
      %v519 = vsub.f32 %v383, %v504
      %v520 = vsub.f32 %v385, %v504
      %v521 = vsub.f32 %v388, %v504
      %v522 = vsub.f32 %v390, %v504
      %v523 = vsub.f32 %v393, %v504
      %v524 = vsub.f32 %v395, %v504
      %v525 = vsub.f32 %v398, %v504
      %v526 = vsub.f32 %v400, %v504
      %v527 = vsub.f32 %v403, %v504
      %v528 = vsub.f32 %v405, %v504
      %v529 = vsub.f32 %v408, %v504
      %v530 = vsub.f32 %v410, %v504
      %v531 = vsub.f32 %v413, %v504
      %v532 = vsub.f32 %v415, %v504
      %v533 = vsub.f32 %v418, %v504
      %v534 = vsub.f32 %v420, %v504
      %v535 = vsub.f32 %v423, %v504
      %v536 = vsub.f32 %v425, %v504
      %v537 = vmul.f32 %v505, %v505
      %v538 = vmul.f32 %v506, %v506
      %v539 = vmul.f32 %v507, %v507
      %v540 = vmul.f32 %v508, %v508
      %v541 = vmul.f32 %v509, %v509
      %v542 = vmul.f32 %v510, %v510
      %v543 = vmul.f32 %v511, %v511
      %v544 = vmul.f32 %v512, %v512
      %v545 = vmul.f32 %v513, %v513
      %v546 = vmul.f32 %v514, %v514
      %v547 = vmul.f32 %v515, %v515
      %v548 = vmul.f32 %v516, %v516
      %v549 = vmul.f32 %v517, %v517
      %v550 = vmul.f32 %v518, %v518
      %v551 = vmul.f32 %v519, %v519
      %v552 = vmul.f32 %v520, %v520
      %v553 = vmul.f32 %v521, %v521
      %v554 = vmul.f32 %v522, %v522
      %v555 = vmul.f32 %v523, %v523
      %v556 = vmul.f32 %v524, %v524
      %v557 = vmul.f32 %v525, %v525
      %v558 = vmul.f32 %v526, %v526
      %v559 = vmul.f32 %v527, %v527
      %v560 = vmul.f32 %v528, %v528
      %v561 = vmul.f32 %v529, %v529
      %v562 = vmul.f32 %v530, %v530
      %v563 = vmul.f32 %v531, %v531
      %v564 = vmul.f32 %v532, %v532
      %v565 = vmul.f32 %v533, %v533
      %v566 = vmul.f32 %v534, %v534
      %v567 = vmul.f32 %v535, %v535
      %v568 = vmul.f32 %v536, %v536
      %v569 = vsel %vm427, %v537, 0.0
      %v570 = vsel %vm427, %v538, 0.0
      %v571 = vadd.f32 %v569, %v570
      %v572 = vsel %vm427, %v539, 0.0
      %v573 = vadd.f32 %v571, %v572
      %v574 = vsel %vm427, %v540, 0.0
      %v575 = vadd.f32 %v573, %v574
      %v576 = vsel %vm427, %v541, 0.0
      %v577 = vadd.f32 %v575, %v576
      %v578 = vsel %vm427, %v542, 0.0
      %v579 = vadd.f32 %v577, %v578
      %v580 = vsel %vm427, %v543, 0.0
      %v581 = vadd.f32 %v579, %v580
      %v582 = vsel %vm427, %v544, 0.0
      %v583 = vadd.f32 %v581, %v582
      %v584 = vsel %vm427, %v545, 0.0
      %v585 = vadd.f32 %v583, %v584
      %v586 = vsel %vm427, %v546, 0.0
      %v587 = vadd.f32 %v585, %v586
      %v588 = vsel %vm427, %v547, 0.0
      %v589 = vadd.f32 %v587, %v588
      %v590 = vsel %vm427, %v548, 0.0
      %v591 = vadd.f32 %v589, %v590
      %v592 = vsel %vm427, %v549, 0.0
      %v593 = vadd.f32 %v591, %v592
      %v594 = vsel %vm427, %v550, 0.0
      %v595 = vadd.f32 %v593, %v594
      %v596 = vsel %vm427, %v551, 0.0
      %v597 = vadd.f32 %v595, %v596
      %v598 = vsel %vm427, %v552, 0.0
      %v599 = vadd.f32 %v597, %v598
      %v600 = vsel %vm427, %v553, 0.0
      %v601 = vadd.f32 %v599, %v600
      %v602 = vsel %vm427, %v554, 0.0
      %v603 = vadd.f32 %v601, %v602
      %v604 = vsel %vm427, %v555, 0.0
      %v605 = vadd.f32 %v603, %v604
      %v606 = vsel %vm427, %v556, 0.0
      %v607 = vadd.f32 %v605, %v606
      %v608 = vsel %vm427, %v557, 0.0
      %v609 = vadd.f32 %v607, %v608
      %v610 = vsel %vm427, %v558, 0.0
      %v611 = vadd.f32 %v609, %v610
      %v612 = vsel %vm427, %v559, 0.0
      %v613 = vadd.f32 %v611, %v612
      %v614 = vsel %vm427, %v560, 0.0
      %v615 = vadd.f32 %v613, %v614
      %v616 = vsel %vm427, %v561, 0.0
      %v617 = vadd.f32 %v615, %v616
      %v618 = vsel %vm427, %v562, 0.0
      %v619 = vadd.f32 %v617, %v618
      %v620 = vsel %vm427, %v563, 0.0
      %v621 = vadd.f32 %v619, %v620
      %v622 = vsel %vm427, %v564, 0.0
      %v623 = vadd.f32 %v621, %v622
      %v624 = vsel %vm427, %v565, 0.0
      %v625 = vadd.f32 %v623, %v624
      %v626 = vsel %vm427, %v566, 0.0
      %v627 = vadd.f32 %v625, %v626
      %v628 = vsel %vm427, %v567, 0.0
      %v629 = vadd.f32 %v627, %v628
      %v630 = vsel %vm427, %v568, 0.0
      %v631 = vadd.f32 %v629, %v630
      %v632 = vrot.slane %v631, 4
      %v633 = vadd.f32 %v631, %v632
      %v634 = vrot.slane %v633, 2
      %v635 = vadd.f32 %v633, %v634
      %v636 = vrot.slane %v635, 1
      %v637 = vadd.f32 %v635, %v636
      %v638 = vmul.f32 %v637, %v503
      %v639 = vadd.f32 %v638, 1e-05
      %v640 = vrsqrt.pop %v639
      %v641 = vmul.f32 %v640, %v639
      %v642 = vmul.f32 %v641, %v640
      %v643 = vmul.f32 0.5, %v642
      %v644 = vsub.f32 1.5, %v643
      %v645 = vmul.f32 %v640, %v644
      %vm646 = vweird.f32 %v639
      %vm647 = vweird.f32 %v640
      %vm648 = vmor %vm646, %vm647
      %v649 = vsel %vm648, %v640, %v645
      %v650 = vmul.f32 %v505, %v649
      %v651 = vmul.f32 %v506, %v649
      %v652 = vmul.f32 %v507, %v649
      %v653 = vmul.f32 %v508, %v649
      %v654 = vmul.f32 %v509, %v649
      %v655 = vmul.f32 %v510, %v649
      %v656 = vmul.f32 %v511, %v649
      %v657 = vmul.f32 %v512, %v649
      %v658 = vmul.f32 %v513, %v649
      %v659 = vmul.f32 %v514, %v649
      %v660 = vmul.f32 %v515, %v649
      %v661 = vmul.f32 %v516, %v649
      %v662 = vmul.f32 %v517, %v649
      %v663 = vmul.f32 %v518, %v649
      %v664 = vmul.f32 %v519, %v649
      %v665 = vmul.f32 %v520, %v649
      %v666 = vmul.f32 %v521, %v649
      %v667 = vmul.f32 %v522, %v649
      %v668 = vmul.f32 %v523, %v649
      %v669 = vmul.f32 %v524, %v649
      %v670 = vmul.f32 %v525, %v649
      %v671 = vmul.f32 %v526, %v649
      %v672 = vmul.f32 %v527, %v649
      %v673 = vmul.f32 %v528, %v649
      %v674 = vmul.f32 %v529, %v649
      %v675 = vmul.f32 %v530, %v649
      %v676 = vmul.f32 %v531, %v649
      %v677 = vmul.f32 %v532, %v649
      %v678 = vmul.f32 %v533, %v649
      %v679 = vmul.f32 %v534, %v649
      %v680 = vmul.f32 %v535, %v649
      %v681 = vmul.f32 %v536, %v649
      %vm682 = vcmp.ge.f32.partialorder %v650, 0.0
      %vm683 = vcmp.ge.f32.partialorder %v651, 0.0
      %vm684 = vcmp.ge.f32.partialorder %v652, 0.0
      %vm685 = vcmp.ge.f32.partialorder %v653, 0.0
      %vm686 = vcmp.ge.f32.partialorder %v654, 0.0
      %vm687 = vcmp.ge.f32.partialorder %v655, 0.0
      %vm688 = vcmp.ge.f32.partialorder %v656, 0.0
      %vm689 = vcmp.ge.f32.partialorder %v657, 0.0
      %vm690 = vcmp.ge.f32.partialorder %v658, 0.0
      %vm691 = vcmp.ge.f32.partialorder %v659, 0.0
      %vm692 = vcmp.ge.f32.partialorder %v660, 0.0
      %vm693 = vcmp.ge.f32.partialorder %v661, 0.0
      %vm694 = vcmp.ge.f32.partialorder %v662, 0.0
      %vm695 = vcmp.ge.f32.partialorder %v663, 0.0
      %vm696 = vcmp.ge.f32.partialorder %v664, 0.0
      %vm697 = vcmp.ge.f32.partialorder %v665, 0.0
      %vm698 = vcmp.ge.f32.partialorder %v666, 0.0
      %vm699 = vcmp.ge.f32.partialorder %v667, 0.0
      %vm700 = vcmp.ge.f32.partialorder %v668, 0.0
      %vm701 = vcmp.ge.f32.partialorder %v669, 0.0
      %vm702 = vcmp.ge.f32.partialorder %v670, 0.0
      %vm703 = vcmp.ge.f32.partialorder %v671, 0.0
      %vm704 = vcmp.ge.f32.partialorder %v672, 0.0
      %vm705 = vcmp.ge.f32.partialorder %v673, 0.0
      %vm706 = vcmp.ge.f32.partialorder %v674, 0.0
      %vm707 = vcmp.ge.f32.partialorder %v675, 0.0
      %vm708 = vcmp.ge.f32.partialorder %v676, 0.0
      %vm709 = vcmp.ge.f32.partialorder %v677, 0.0
      %vm710 = vcmp.ge.f32.partialorder %v678, 0.0
      %vm711 = vcmp.ge.f32.partialorder %v679, 0.0
      %vm712 = vcmp.ge.f32.partialorder %v680, 0.0
      %vm713 = vcmp.ge.f32.partialorder %v681, 0.0
      %v714 = vmul.f32 %v650, 0.01
      %v715 = vmul.f32 %v651, 0.01
      %v716 = vmul.f32 %v652, 0.01
      %v717 = vmul.f32 %v653, 0.01
      %v718 = vmul.f32 %v654, 0.01
      %v719 = vmul.f32 %v655, 0.01
      %v720 = vmul.f32 %v656, 0.01
      %v721 = vmul.f32 %v657, 0.01
      %v722 = vmul.f32 %v658, 0.01
      %v723 = vmul.f32 %v659, 0.01
      %v724 = vmul.f32 %v660, 0.01
      %v725 = vmul.f32 %v661, 0.01
      %v726 = vmul.f32 %v662, 0.01
      %v727 = vmul.f32 %v663, 0.01
      %v728 = vmul.f32 %v664, 0.01
      %v729 = vmul.f32 %v665, 0.01
      %v730 = vmul.f32 %v666, 0.01
      %v731 = vmul.f32 %v667, 0.01
      %v732 = vmul.f32 %v668, 0.01
      %v733 = vmul.f32 %v669, 0.01
      %v734 = vmul.f32 %v670, 0.01
      %v735 = vmul.f32 %v671, 0.01
      %v736 = vmul.f32 %v672, 0.01
      %v737 = vmul.f32 %v673, 0.01
      %v738 = vmul.f32 %v674, 0.01
      %v739 = vmul.f32 %v675, 0.01
      %v740 = vmul.f32 %v676, 0.01
      %v741 = vmul.f32 %v677, 0.01
      %v742 = vmul.f32 %v678, 0.01
      %v743 = vmul.f32 %v679, 0.01
      %v744 = vmul.f32 %v680, 0.01
      %v745 = vmul.f32 %v681, 0.01
      %v746 = vsel %vm682, %v650, %v714
      %v747 = vsel %vm683, %v651, %v715
      %v748 = vsel %vm684, %v652, %v716
      %v749 = vsel %vm685, %v653, %v717
      %v750 = vsel %vm686, %v654, %v718
      %v751 = vsel %vm687, %v655, %v719
      %v752 = vsel %vm688, %v656, %v720
      %v753 = vsel %vm689, %v657, %v721
      %v754 = vsel %vm690, %v658, %v722
      %v755 = vsel %vm691, %v659, %v723
      %v756 = vsel %vm692, %v660, %v724
      %v757 = vsel %vm693, %v661, %v725
      %v758 = vsel %vm694, %v662, %v726
      %v759 = vsel %vm695, %v663, %v727
      %v760 = vsel %vm696, %v664, %v728
      %v761 = vsel %vm697, %v665, %v729
      %v762 = vsel %vm698, %v666, %v730
      %v763 = vsel %vm699, %v667, %v731
      %v764 = vsel %vm700, %v668, %v732
      %v765 = vsel %vm701, %v669, %v733
      %v766 = vsel %vm702, %v670, %v734
      %v767 = vsel %vm703, %v671, %v735
      %v768 = vsel %vm704, %v672, %v736
      %v769 = vsel %vm705, %v673, %v737
      %v770 = vsel %vm706, %v674, %v738
      %v771 = vsel %vm707, %v675, %v739
      %v772 = vsel %vm708, %v676, %v740
      %v773 = vsel %vm709, %v677, %v741
      %v774 = vsel %vm710, %v678, %v742
      %v775 = vsel %vm711, %v679, %v743
      %v776 = vsel %vm712, %v680, %v744
      %v777 = vsel %vm713, %v681, %v745
      %778 = vst.msk [vmem:[%s143] sm:$0xff] %vm427, %v746
      %779 = vst.msk [vmem:[%s143 + $0x8] sm:$0xff] %vm427, %v747
      %780 = vst.msk [vmem:[%s143 + $0x10] sm:$0xff] %vm427, %v748
      %781 = vst.msk [vmem:[%s143 + $0x18] sm:$0xff] %vm427, %v749
      %782 = vst.msk [vmem:[%s143 + $0x20] sm:$0xff] %vm427, %v750
      %783 = vst.msk [vmem:[%s143 + $0x28] sm:$0xff] %vm427, %v751
      %784 = vst.msk [vmem:[%s143 + $0x30] sm:$0xff] %vm427, %v752
      %785 = vst.msk [vmem:[%s143 + $0x38] sm:$0xff] %vm427, %v753
      %786 = vst.msk [vmem:[%s143 + $0x40] sm:$0xff] %vm427, %v754
      %787 = vst.msk [vmem:[%s143 + $0x48] sm:$0xff] %vm427, %v755
      %788 = vst.msk [vmem:[%s143 + $0x50] sm:$0xff] %vm427, %v756
      %789 = vst.msk [vmem:[%s143 + $0x58] sm:$0xff] %vm427, %v757
      %790 = vst.msk [vmem:[%s143 + $0x60] sm:$0xff] %vm427, %v758
      %791 = vst.msk [vmem:[%s143 + $0x68] sm:$0xff] %vm427, %v759
      %792 = vst.msk [vmem:[%s143 + $0x70] sm:$0xff] %vm427, %v760
      %793 = vst.msk [vmem:[%s143 + $0x78] sm:$0xff] %vm427, %v761
      %794 = vst.msk [vmem:[%s143 + $0x80] sm:$0xff] %vm427, %v762
      %795 = vst.msk [vmem:[%s143 + $0x88] sm:$0xff] %vm427, %v763
      %796 = vst.msk [vmem:[%s143 + $0x90] sm:$0xff] %vm427, %v764
      %797 = vst.msk [vmem:[%s143 + $0x98] sm:$0xff] %vm427, %v765
      %798 = vst.msk [vmem:[%s143 + $0xa0] sm:$0xff] %vm427, %v766
      %799 = vst.msk [vmem:[%s143 + $0xa8] sm:$0xff] %vm427, %v767
      %800 = vst.msk [vmem:[%s143 + $0xb0] sm:$0xff] %vm427, %v768
      %801 = vst.msk [vmem:[%s143 + $0xb8] sm:$0xff] %vm427, %v769
      %802 = vst.msk [vmem:[%s143 + $0xc0] sm:$0xff] %vm427, %v770
      %803 = vst.msk [vmem:[%s143 + $0xc8] sm:$0xff] %vm427, %v771
      %804 = vst.msk [vmem:[%s143 + $0xd0] sm:$0xff] %vm427, %v772
      %805 = vst.msk [vmem:[%s143 + $0xd8] sm:$0xff] %vm427, %v773
      %806 = vst.msk [vmem:[%s143 + $0xe0] sm:$0xff] %vm427, %v774
      %807 = vst.msk [vmem:[%s143 + $0xe8] sm:$0xff] %vm427, %v775
      %808 = vst.msk [vmem:[%s143 + $0xf0] sm:$0xff] %vm427, %v776
      %809 = vst.msk [vmem:[%s143 + $0xf8] sm:$0xff] %vm427, %v777
      %p810 = scmp.lt.s32.totalorder %s13, 1
      %s811 = scalar_select %p810, %s13, 1
      %s812 = smul.addr %s811, 32
      %s813 = smul.addr %s812, 8
      %s814 = scalar_lea.vmem %s2, %s813
      // Predicated region
      $region29: #{_lambda_.4} parent=27 // pred_check
        %p815 = pneg %p78
      $region30: #{_lambda_.4} parent=27 // pred_check_branch
        %817 = sbr.rel (%p815) target = $region32
      $region31: #{_lambda_.4} parent=27 // pred_region
        _
      $region32: #{_lambda_.4} parent=27 // pred_fallthru
        _
    $region28: #{_lambda_.4} parent=5 // pred_fallthru
      _
    %p818 = scmp.le.s32.totalorder 2, %s8
    // Predicated region
    $region33: #{_lambda_.4} parent=5 // pred_check
      %p819 = pneg %p818
    $region34: #{_lambda_.4} parent=5 // pred_check_branch
      %821 = sbr.rel (%p819) target = $region36
    $region35: #{_lambda_.4} parent=5 // pred_region
      %s822 = ssub.s32 %s8, 2
      // Predicated region
      $region37: #{_lambda_.4} parent=35 // pred_check
        %p823 = pneg %p84
      $region38: #{_lambda_.4} parent=35 // pred_check_branch
        %825 = sbr.rel (%p823) target = $region40
      $region39: #{_lambda_.4} parent=35 // pred_region
        %p826 = scmp.lt.s32.totalorder %s14, 1
        %s827 = scalar_select %p826, %s14, 1
        %s828 = smul.addr %s827, 32
        %s829 = smul.addr %s828, 8
        %s830 = scalar_lea.vmem %s2, %s829
      $region40: #{_lambda_.4} parent=35 // pred_fallthru
        _
    $region36: #{_lambda_.4} parent=5 // pred_fallthru
      _
  $region6: #{_lambda_.4} parent=0 // loop_footer
    %s12 = sadd.s32 1, %s8
  $region7: #{_lambda_.4} parent=0 // loop_footer_branch
    %7 = sbr.rel target = $region3
  $region8: #{_lambda_.4} parent=0 // loop_exit
    _

// kernel: reverse.3
$region0: #{reverse.3}
  #allocation0 [shape = 's32[1]{0}', space=sflag, size = 0x4, scoped, tag = 'scoped memory for reverse.3']
  %s0 = inlined_call_operand.vmem [shape: f32[2,32,8,3], index: 0, kind: input, shape index: {}]
  %s1 = inlined_call_operand.vmem [shape: f32[2,32,8,3], index: 1, kind: output, shape index: {}]
  %s2 = scalar_lea.vmem %s0, 16
  %v3 = vld [vmem:[%s2] sm:$0xff]
  %4 = vst [vmem:[%s1] sm:$0xff] %v3
  %s5 = scalar_lea.vmem %s0, 40
  %v6 = vld [vmem:[%s5] sm:$0xff]
  %s7 = scalar_lea.vmem %s1, 24
  %8 = vst [vmem:[%s7] sm:$0xff] %v6
  %s9 = scalar_lea.vmem %s0, 8
  %v10 = vld [vmem:[%s9] sm:$0xff]
  %s11 = scalar_lea.vmem %s1, 8
  %12 = vst [vmem:[%s11] sm:$0xff] %v10
  %s13 = scalar_lea.vmem %s0, 32
  %v14 = vld [vmem:[%s13] sm:$0xff]
  %s15 = scalar_lea.vmem %s1, 32
  %16 = vst [vmem:[%s15] sm:$0xff] %v14
  %v17 = vld [vmem:[%s0] sm:$0xff]
  %s18 = scalar_lea.vmem %s1, 16
  %19 = vst [vmem:[%s18] sm:$0xff] %v17
  %s20 = scalar_lea.vmem %s0, 24
  %v21 = vld [vmem:[%s20] sm:$0xff]
  %s22 = scalar_lea.vmem %s1, 40
  %23 = vst [vmem:[%s22] sm:$0xff] %v21

// kernel: _lambda_.6
$region0: #{_lambda_.6}
  #allocation0 [shape = 'u32[]', space=smem, size = 0x4, offset = 0x4, fixed_abs, tag = 'smem constant byte address 0x4 - core index']
  #allocation1 [shape = 'u32[72,128]{1,0:T(1,128)}', space=vmem, size = 0x9000, scoped, tag = 'internal scratch']
  %s0 = inlined_call_operand.vmem [shape: bf16[2,40,64], index: 0, kind: input, shape index: {}]
  %s1 = inlined_call_operand.vmem [shape: bf16[64,64], index: 1, kind: input, shape index: {}]
  %s2 = inlined_call_operand.vmem [shape: f32[2,40,64], index: 2, kind: output, shape index: {}]
  %s3 = sld [smem:[#allocation0]]
  $region41: #{_lambda_.6} parent=0
    _
  %s5 = ssub.s32 1, %s3
  %s6 = scalar_select 0, %s5, %s3
  loop: start=0, step=1, limit=4
  $region2: #{_lambda_.6} parent=0 // loop_pre_header
    _
  $region3: #{_lambda_.6} parent=0 // loop_header
    %s8 = sphi 0, %s12
    %p9 = scmp.ge.s32.totalorder %s8, 4
    %s18 = sphi 0, %s20
    %s21 = sphi 0, %s18
    %s22 = sphi 0, %s21
    %s38 = sphi 0, %s22
    %s42 = sphi 0, %s42
    %s44 = sphi 0, %s42
    %s45 = sphi 0, %s44
    %s59 = sphi 0, %s45
    %s65 = sphi 0, %s67
    %s68 = sphi 0, %s65
    %s69 = sphi 0, %s68
    %s85 = sphi 0, %s69
  $region4: #{_lambda_.6} parent=0 // loop_header_branch
    %11 = sbr.rel (%p9) target = $region8
  $region5: #{_lambda_.6} parent=0 // loop_body
    %s13 = ssub.s32 %s8, 1
    %s14 = ssub.s32 %s8, 2
    %s15 = sadd.s32 %s8, 1
    %s16 = ssub.s32 %s8, %s15
    %p17 = scmp.eq.s32.totalorder %s16, 0
    %s19 = sadd.s32 %s18, 1
    %s20 = scalar_select %p17, %s18, %s19
    %p23 = pneg %p17
    %p24 = scmp.eq.s32.totalorder %s8, 1
    %p25 = por %p23, %p24
    %p26 = scmp.ne.s32.totalorder %s18, %s21
    %p27 = scmp.eq.s32.totalorder %s8, 0
    %p28 = por %p26, %p27
    %p29 = scmp.ne.s32.totalorder %s18, %s21
    %p30 = scmp.eq.s32.totalorder %s13, 1
    %p31 = por %p29, %p30
    %p32 = scmp.ne.s32.totalorder %s21, %s22
    %p33 = scmp.eq.s32.totalorder %s13, 0
    %p34 = por %p32, %p33
    %p35 = scmp.ne.s32.totalorder %s21, %s22
    %p36 = scmp.eq.s32.totalorder %s14, 1
    %p37 = por %p35, %p36
    %p39 = scmp.ne.s32.totalorder %s22, %s38
    %p40 = scmp.eq.s32.totalorder %s14, 0
    %p41 = por %p39, %p40
    %s43 = sadd.s32 %s42, 1
    %p46 = scmp.eq.s32.totalorder %s8, 1
    %p47 = scmp.ne.s32.totalorder %s42, %s44
    %p48 = scmp.eq.s32.totalorder %s8, 0
    %p49 = por %p47, %p48
    %p50 = scmp.ne.s32.totalorder %s42, %s44
    %p51 = scmp.eq.s32.totalorder %s13, 1
    %p52 = por %p50, %p51
    %p53 = scmp.ne.s32.totalorder %s44, %s45
    %p54 = scmp.eq.s32.totalorder %s13, 0
    %p55 = por %p53, %p54
    %p56 = scmp.ne.s32.totalorder %s44, %s45
    %p57 = scmp.eq.s32.totalorder %s14, 1
    %p58 = por %p56, %p57
    %p60 = scmp.ne.s32.totalorder %s45, %s59
    %p61 = scmp.eq.s32.totalorder %s14, 0
    %p62 = por %p60, %p61
    %s63 = ssub.s32 %s8, %s15
    %p64 = scmp.eq.s32.totalorder %s63, 0
    %s66 = sadd.s32 %s65, 1
    %s67 = scalar_select %p64, %s65, %s66
    %p70 = pneg %p64
    %p71 = scmp.eq.s32.totalorder %s8, 1
    %p72 = por %p70, %p71
    %p73 = scmp.ne.s32.totalorder %s65, %s68
    %p74 = scmp.eq.s32.totalorder %s8, 0
    %p75 = por %p73, %p74
    %p76 = scmp.ne.s32.totalorder %s65, %s68
    %p77 = scmp.eq.s32.totalorder %s13, 1
    %p78 = por %p76, %p77
    %p79 = scmp.ne.s32.totalorder %s68, %s69
    %p80 = scmp.eq.s32.totalorder %s13, 0
    %p81 = por %p79, %p80
    %p82 = scmp.ne.s32.totalorder %s68, %s69
    %p83 = scmp.eq.s32.totalorder %s14, 1
    %p84 = por %p82, %p83
    %p86 = scmp.ne.s32.totalorder %s69, %s85
    %p87 = scmp.eq.s32.totalorder %s14, 0
    %p88 = por %p86, %p87
    %p89 = scmp.le.s32.totalorder 1, %s8
    %p90 = scmp.lt.s32.totalorder %s8, 3
    %p91 = pnand %p89, %p90
    %p92 = pneg %p91
    // Predicated region
    $region9: #{_lambda_.6} parent=5 // pred_check
      _
    $region10: #{_lambda_.6} parent=5 // pred_check_branch
      %94 = sbr.rel (%p91) target = $region12
    $region11: #{_lambda_.6} parent=5 // pred_region
      %s95 = ssub.s32 %s8, 1
      // Predicated region
      $region13: #{_lambda_.6} parent=11 // pred_check
        %p96 = pneg %p55
      $region14: #{_lambda_.6} parent=11 // pred_check_branch
        %98 = sbr.rel (%p96) target = $region16
      $region15: #{_lambda_.6} parent=11 // pred_region
        _
      $region16: #{_lambda_.6} parent=11 // pred_fallthru
        _
    $region12: #{_lambda_.6} parent=5 // pred_fallthru
      _
    %p99 = scmp.lt.s32.totalorder %s8, 2
    // Predicated region
    $region17: #{_lambda_.6} parent=5 // pred_check
      %p100 = pneg %p99
    $region18: #{_lambda_.6} parent=5 // pred_check_branch
      %102 = sbr.rel (%p100) target = $region20
    $region19: #{_lambda_.6} parent=5 // pred_region
      // Predicated region
      $region21: #{_lambda_.6} parent=19 // pred_check
        %p103 = pneg %p28
      $region22: #{_lambda_.6} parent=19 // pred_check_branch
        %105 = sbr.rel (%p103) target = $region24
      $region23: #{_lambda_.6} parent=19 // pred_region
        %p106 = scmp.lt.s32.totalorder %s8, 1
        %s107 = scalar_select %p106, %s8, 1
        %s108 = smul.addr %s107, 5
        %s109 = smul.addr %s108, 4
        %s110 = scalar_lea.vmem %s0, %s109
      $region24: #{_lambda_.6} parent=19 // pred_fallthru
        _
    $region20: #{_lambda_.6} parent=5 // pred_fallthru
      _
    %p111 = scmp.le.s32.totalorder 1, %s8
    %p112 = scmp.lt.s32.totalorder %s8, 3
    %p113 = pnand %p111, %p112
    %p114 = pneg %p113
    // Predicated region
    $region25: #{_lambda_.6} parent=5 // pred_check
      _
    $region26: #{_lambda_.6} parent=5 // pred_check_branch
      %116 = sbr.rel (%p113) target = $region28
    $region27: #{_lambda_.6} parent=5 // pred_region
      %s117 = ssub.s32 %s8, 1
      %p118 = scmp.lt.s32.totalorder %s13, 1
      %s119 = scalar_select %p118, %s13, 1
      %s120 = smul.addr %s119, 5
      %s121 = smul.addr %s120, 4
      %s122 = scalar_lea.vmem %s0, %s121
      %p123 = pneg %p34
      %p124 = pneg %p31
      %p125 = pneg %p55
      %p126 = pneg %p52
      %p127 = pneg %p81
      %p128 = pneg %p78
      %p129 = scmp.lt.s32.totalorder %s13, 1
      %s130 = scalar_select %p129, %s13, 1
      %s131 = smul.addr %s130, 5
      %s132 = smul.addr %s131, 8
      %s133 = scalar_lea.vmem %s2, %s132
      %p134 = scmp.lt.s32.totalorder %s13, 1
      %s135 = scalar_select %p134, %s13, 1
      %s136 = smul.addr %s135, 5
      %s137 = smul.addr %s136, 4
      %s138 = scalar_lea.vmem %s0, %s137
      %p139 = scmp.lt.s32.totalorder %s13, 1
      %s140 = scalar_select %p139, %s13, 1
      %s141 = smul.addr %s140, 5
      %s142 = smul.addr %s141, 8
      %s143 = scalar_lea.vmem %s2, %s142
      %v145 = vld [vmem:[%s138] sm:$0xf]
      %v146 = vld [vmem:[%s138 + $0x4] sm:$0xf]
      %v147 = vld [vmem:[%s138 + $0x8] sm:$0xf]
      %v148 = vld [vmem:[%s138 + $0xc] sm:$0xf]
      %v149 = vld [vmem:[%s138 + $0x10] sm:$0xf]
      %v150 = vld [vmem:[%s1] sm:$0xf]
      %v151 = vld [vmem:[%s1 + $0x4] sm:$0xf]
      %v152 = vld [vmem:[%s1 + $0x8] sm:$0xf]
      %v153 = vld [vmem:[%s1 + $0xc] sm:$0xf]
      %v154 = vld [vmem:[%s1 + $0x10] sm:$0xf]
      %v155 = vld [vmem:[%s1 + $0x14] sm:$0xf]
      %v156 = vld [vmem:[%s1 + $0x18] sm:$0xf]
      %v157 = vld [vmem:[%s1 + $0x1c] sm:$0xf]
      %v163 = vunpack.c.l.b16 %v145
      %v164 = vunpack.c.l.b16 %v146
      %v165 = vunpack.c.l.b16 %v147
      %v166 = vunpack.c.l.b16 %v148
      %v167 = vunpack.c.l.b16 %v149
      %v168 = vpack.c.b16 %v164, %v163
      %v169 = vpack.c.b16 %v166, %v165
      %v170 = vpack.c.b16 %v167, %v167
      %v179 = vunpack.c.l.b16 %v150
      %v180 = vunpack.c.l.b16 %v151
      %v181 = vunpack.c.l.b16 %v152
      %v182 = vunpack.c.l.b16 %v153
      %v183 = vunpack.c.l.b16 %v154
      %v184 = vunpack.c.l.b16 %v155
      %v185 = vunpack.c.l.b16 %v156
      %v186 = vunpack.c.l.b16 %v157
      %v187 = vpack.c.b16 %v180, %v179
      %v188 = vpack.c.b16 %v182, %v181
      %v189 = vpack.c.b16 %v184, %v183
      %v190 = vpack.c.b16 %v186, %v185
      %vm195 = vcmask 523264
      %v197 = vsel %vm195, %v168, 0
      %v200 = vsel %vm195, %v169, 0
      %v203 = vsel %vm195, %v170, 0
      %205 = vmatpush.bf16.msra.mxu0 0
      %206 = vmatpush.bf16.msra.mxu0 0
      %207 = vmatpush.bf16.msra.mxu0 0
      %208 = vmatpush.bf16.msra.mxu0 0
      %209 = vmatpush.bf16.msra.mxu0 %v190
      %210 = vmatpush.bf16.msra.mxu0 %v189
      %211 = vmatpush.bf16.msra.mxu0 %v188
      %212 = vmatpush.bf16.msra.mxu0 %v187
      %213 = vmatmul.bf16.gmra.mxu0 %v197
      %v214 = vpop.f32.mrf.mxu0
      %v215 = vadd.f32 0.0, %v214
      %v216 = vpop.f32.mrf.mxu0
      %v217 = vadd.f32 0.0, %v216
      %218 = vmatmul.bf16.gmra.mxu0 %v200
      %v219 = vpop.f32.mrf.mxu0
      %v220 = vadd.f32 0.0, %v219
      %v221 = vpop.f32.mrf.mxu0
      %v222 = vadd.f32 0.0, %v221
      %223 = vmatmul.bf16.gmra.mxu0 %v203
      %v224 = vpop.f32.mrf.mxu0
      %v225 = vadd.f32 0.0, %v224
      %v226 = vpop.f32.mrf.mxu0
      %227 = vdwg.mxu0
      %v228 = vsel %vm195, %v215, 0.0
      %v229 = vsel %vm195, %v217, 0.0
      %v230 = vadd.f32 %v228, %v229
      %v231 = vsel %vm195, %v220, 0.0
      %v232 = vadd.f32 %v230, %v231
      %v233 = vsel %vm195, %v222, 0.0
      %v234 = vadd.f32 %v232, %v233
      %v235 = vsel %vm195, %v225, 0.0
      %v236 = vadd.f32 %v234, %v235
      %v237 = vrot.slane %v236, 4
      %v238 = vadd.f32 %v236, %v237
      %v239 = vrot.slane %v238, 2
      %v240 = vadd.f32 %v238, %v239
      %v241 = vrot.slane %v240, 1
      %v242 = vadd.f32 %v240, %v241
      %v243 = vrcp.pop 40.0
      %v244 = vmul.f32 40.0, %v243
      %v245 = vsub.f32 1.0, %v244
      %v246 = vmul.f32 %v243, %v245
      %v247 = vadd.f32 %v243, %v246
      %vm248 = vweird.f32 %v243
      %v249 = vsel %vm248, %v243, %v247
      %v250 = vmul.f32 %v242, %v249
      %v251 = vsub.f32 %v215, %v250
      %v252 = vsub.f32 %v217, %v250
      %v253 = vsub.f32 %v220, %v250
      %v254 = vsub.f32 %v222, %v250
      %v255 = vsub.f32 %v225, %v250
      %v256 = vmul.f32 %v251, %v251
      %v257 = vmul.f32 %v252, %v252
      %v258 = vmul.f32 %v253, %v253
      %v259 = vmul.f32 %v254, %v254
      %v260 = vmul.f32 %v255, %v255
      %v261 = vsel %vm195, %v256, 0.0
      %v262 = vsel %vm195, %v257, 0.0
      %v263 = vadd.f32 %v261, %v262
      %v264 = vsel %vm195, %v258, 0.0
      %v265 = vadd.f32 %v263, %v264
      %v266 = vsel %vm195, %v259, 0.0
      %v267 = vadd.f32 %v265, %v266
      %v268 = vsel %vm195, %v260, 0.0
      %v269 = vadd.f32 %v267, %v268
      %v270 = vrot.slane %v269, 4
      %v271 = vadd.f32 %v269, %v270
      %v272 = vrot.slane %v271, 2
      %v273 = vadd.f32 %v271, %v272
      %v274 = vrot.slane %v273, 1
      %v275 = vadd.f32 %v273, %v274
      %v276 = vmul.f32 %v275, %v249
      %v277 = vadd.f32 %v276, 1e-05
      %v278 = vrsqrt.pop %v277
      %v279 = vmul.f32 %v278, %v277
      %v280 = vmul.f32 %v279, %v278
      %v281 = vmul.f32 0.5, %v280
      %v282 = vsub.f32 1.5, %v281
      %v283 = vmul.f32 %v278, %v282
      %vm284 = vweird.f32 %v277
      %vm285 = vweird.f32 %v278
      %vm286 = vmor %vm284, %vm285
      %v287 = vsel %vm286, %v278, %v283
      %v288 = vmul.f32 %v251, %v287
      %v289 = vmul.f32 %v252, %v287
      %v290 = vmul.f32 %v253, %v287
      %v291 = vmul.f32 %v254, %v287
      %v292 = vmul.f32 %v255, %v287
      %vm293 = vcmp.ge.f32.partialorder %v288, 0.0
      %vm294 = vcmp.ge.f32.partialorder %v289, 0.0
      %vm295 = vcmp.ge.f32.partialorder %v290, 0.0
      %vm296 = vcmp.ge.f32.partialorder %v291, 0.0
      %vm297 = vcmp.ge.f32.partialorder %v292, 0.0
      %v298 = vmul.f32 %v288, 0.01
      %v299 = vmul.f32 %v289, 0.01
      %v300 = vmul.f32 %v290, 0.01
      %v301 = vmul.f32 %v291, 0.01
      %v302 = vmul.f32 %v292, 0.01
      %v303 = vsel %vm293, %v288, %v298
      %v304 = vsel %vm294, %v289, %v299
      %v305 = vsel %vm295, %v290, %v300
      %v306 = vsel %vm296, %v291, %v301
      %v307 = vsel %vm297, %v292, %v302
      %308 = vst.msk [vmem:[%s143] sm:$0xff] %vm195, %v303
      %309 = vst.msk [vmem:[%s143 + $0x8] sm:$0xff] %vm195, %v304
      %310 = vst.msk [vmem:[%s143 + $0x10] sm:$0xff] %vm195, %v305
      %311 = vst.msk [vmem:[%s143 + $0x18] sm:$0xff] %vm195, %v306
      %312 = vst.msk [vmem:[%s143 + $0x20] sm:$0xff] %vm195, %v307
      %p313 = scmp.lt.s32.totalorder %s13, 1
      %s314 = scalar_select %p313, %s13, 1
      %s315 = smul.addr %s314, 5
      %s316 = smul.addr %s315, 8
      %s317 = scalar_lea.vmem %s2, %s316
      // Predicated region
      $region29: #{_lambda_.6} parent=27 // pred_check
        %p318 = pneg %p78
      $region30: #{_lambda_.6} parent=27 // pred_check_branch
        %320 = sbr.rel (%p318) target = $region32
      $region31: #{_lambda_.6} parent=27 // pred_region
        _
      $region32: #{_lambda_.6} parent=27 // pred_fallthru
        _
    $region28: #{_lambda_.6} parent=5 // pred_fallthru
      _
    %p321 = scmp.le.s32.totalorder 2, %s8
    // Predicated region
    $region33: #{_lambda_.6} parent=5 // pred_check
      %p322 = pneg %p321
    $region34: #{_lambda_.6} parent=5 // pred_check_branch
      %324 = sbr.rel (%p322) target = $region36
    $region35: #{_lambda_.6} parent=5 // pred_region
      %s325 = ssub.s32 %s8, 2
      // Predicated region
      $region37: #{_lambda_.6} parent=35 // pred_check
        %p326 = pneg %p84
      $region38: #{_lambda_.6} parent=35 // pred_check_branch
        %328 = sbr.rel (%p326) target = $region40
      $region39: #{_lambda_.6} parent=35 // pred_region
        %p329 = scmp.lt.s32.totalorder %s14, 1
        %s330 = scalar_select %p329, %s14, 1
        %s331 = smul.addr %s330, 5
        %s332 = smul.addr %s331, 8
        %s333 = scalar_lea.vmem %s2, %s332
      $region40: #{_lambda_.6} parent=35 // pred_fallthru
        _
    $region36: #{_lambda_.6} parent=5 // pred_fallthru
      _
  $region6: #{_lambda_.6} parent=0 // loop_footer
    %s12 = sadd.s32 1, %s8
  $region7: #{_lambda_.6} parent=0 // loop_footer_branch
    %7 = sbr.rel target = $region3
  $region8: #{_lambda_.6} parent=0 // loop_exit
    _

// kernel: _lambda_.5
$region0: #{_lambda_.5}
  #allocation0 [shape = 'u32[]', space=smem, size = 0x4, offset = 0x4, fixed_abs, tag = 'smem constant byte address 0x4 - core index']
  #allocation1 [shape = 'u32[72,128]{1,0:T(1,128)}', space=vmem, size = 0x9000, scoped, tag = 'internal scratch']
  %s0 = inlined_call_operand.vmem [shape: bf16[2,144,64], index: 0, kind: input, shape index: {}]
  %s1 = inlined_call_operand.vmem [shape: bf16[64,64], index: 1, kind: input, shape index: {}]
  %s2 = inlined_call_operand.vmem [shape: f32[2,144,64], index: 2, kind: output, shape index: {}]
  %s3 = sld [smem:[#allocation0]]
  $region41: #{_lambda_.5} parent=0
    _
  %s5 = ssub.s32 1, %s3
  %s6 = scalar_select 0, %s5, %s3
  loop: start=0, step=1, limit=4
  $region2: #{_lambda_.5} parent=0 // loop_pre_header
    _
  $region3: #{_lambda_.5} parent=0 // loop_header
    %s8 = sphi 0, %s12
    %p9 = scmp.ge.s32.totalorder %s8, 4
    %s18 = sphi 0, %s20
    %s21 = sphi 0, %s18
    %s22 = sphi 0, %s21
    %s38 = sphi 0, %s22
    %s42 = sphi 0, %s42
    %s44 = sphi 0, %s42
    %s45 = sphi 0, %s44
    %s59 = sphi 0, %s45
    %s65 = sphi 0, %s67
    %s68 = sphi 0, %s65
    %s69 = sphi 0, %s68
    %s85 = sphi 0, %s69
  $region4: #{_lambda_.5} parent=0 // loop_header_branch
    %11 = sbr.rel (%p9) target = $region8
  $region5: #{_lambda_.5} parent=0 // loop_body
    %s13 = ssub.s32 %s8, 1
    %s14 = ssub.s32 %s8, 2
    %s15 = sadd.s32 %s8, 1
    %s16 = ssub.s32 %s8, %s15
    %p17 = scmp.eq.s32.totalorder %s16, 0
    %s19 = sadd.s32 %s18, 1
    %s20 = scalar_select %p17, %s18, %s19
    %p23 = pneg %p17
    %p24 = scmp.eq.s32.totalorder %s8, 1
    %p25 = por %p23, %p24
    %p26 = scmp.ne.s32.totalorder %s18, %s21
    %p27 = scmp.eq.s32.totalorder %s8, 0
    %p28 = por %p26, %p27
    %p29 = scmp.ne.s32.totalorder %s18, %s21
    %p30 = scmp.eq.s32.totalorder %s13, 1
    %p31 = por %p29, %p30
    %p32 = scmp.ne.s32.totalorder %s21, %s22
    %p33 = scmp.eq.s32.totalorder %s13, 0
    %p34 = por %p32, %p33
    %p35 = scmp.ne.s32.totalorder %s21, %s22
    %p36 = scmp.eq.s32.totalorder %s14, 1
    %p37 = por %p35, %p36
    %p39 = scmp.ne.s32.totalorder %s22, %s38
    %p40 = scmp.eq.s32.totalorder %s14, 0
    %p41 = por %p39, %p40
    %s43 = sadd.s32 %s42, 1
    %p46 = scmp.eq.s32.totalorder %s8, 1
    %p47 = scmp.ne.s32.totalorder %s42, %s44
    %p48 = scmp.eq.s32.totalorder %s8, 0
    %p49 = por %p47, %p48
    %p50 = scmp.ne.s32.totalorder %s42, %s44
    %p51 = scmp.eq.s32.totalorder %s13, 1
    %p52 = por %p50, %p51
    %p53 = scmp.ne.s32.totalorder %s44, %s45
    %p54 = scmp.eq.s32.totalorder %s13, 0
    %p55 = por %p53, %p54
    %p56 = scmp.ne.s32.totalorder %s44, %s45
    %p57 = scmp.eq.s32.totalorder %s14, 1
    %p58 = por %p56, %p57
    %p60 = scmp.ne.s32.totalorder %s45, %s59
    %p61 = scmp.eq.s32.totalorder %s14, 0
    %p62 = por %p60, %p61
    %s63 = ssub.s32 %s8, %s15
    %p64 = scmp.eq.s32.totalorder %s63, 0
    %s66 = sadd.s32 %s65, 1
    %s67 = scalar_select %p64, %s65, %s66
    %p70 = pneg %p64
    %p71 = scmp.eq.s32.totalorder %s8, 1
    %p72 = por %p70, %p71
    %p73 = scmp.ne.s32.totalorder %s65, %s68
    %p74 = scmp.eq.s32.totalorder %s8, 0
    %p75 = por %p73, %p74
    %p76 = scmp.ne.s32.totalorder %s65, %s68
    %p77 = scmp.eq.s32.totalorder %s13, 1
    %p78 = por %p76, %p77
    %p79 = scmp.ne.s32.totalorder %s68, %s69
    %p80 = scmp.eq.s32.totalorder %s13, 0
    %p81 = por %p79, %p80
    %p82 = scmp.ne.s32.totalorder %s68, %s69
    %p83 = scmp.eq.s32.totalorder %s14, 1
    %p84 = por %p82, %p83
    %p86 = scmp.ne.s32.totalorder %s69, %s85
    %p87 = scmp.eq.s32.totalorder %s14, 0
    %p88 = por %p86, %p87
    %p89 = scmp.le.s32.totalorder 1, %s8
    %p90 = scmp.lt.s32.totalorder %s8, 3
    %p91 = pnand %p89, %p90
    %p92 = pneg %p91
    // Predicated region
    $region9: #{_lambda_.5} parent=5 // pred_check
      _
    $region10: #{_lambda_.5} parent=5 // pred_check_branch
      %94 = sbr.rel (%p91) target = $region12
    $region11: #{_lambda_.5} parent=5 // pred_region
      %s95 = ssub.s32 %s8, 1
      // Predicated region
      $region13: #{_lambda_.5} parent=11 // pred_check
        %p96 = pneg %p55
      $region14: #{_lambda_.5} parent=11 // pred_check_branch
        %98 = sbr.rel (%p96) target = $region16
      $region15: #{_lambda_.5} parent=11 // pred_region
        _
      $region16: #{_lambda_.5} parent=11 // pred_fallthru
        _
    $region12: #{_lambda_.5} parent=5 // pred_fallthru
      _
    %p99 = scmp.lt.s32.totalorder %s8, 2
    // Predicated region
    $region17: #{_lambda_.5} parent=5 // pred_check
      %p100 = pneg %p99
    $region18: #{_lambda_.5} parent=5 // pred_check_branch
      %102 = sbr.rel (%p100) target = $region20
    $region19: #{_lambda_.5} parent=5 // pred_region
      // Predicated region
      $region21: #{_lambda_.5} parent=19 // pred_check
        %p103 = pneg %p28
      $region22: #{_lambda_.5} parent=19 // pred_check_branch
        %105 = sbr.rel (%p103) target = $region24
      $region23: #{_lambda_.5} parent=19 // pred_region
        %p106 = scmp.lt.s32.totalorder %s8, 1
        %s107 = scalar_select %p106, %s8, 1
        %s108 = smul.addr %s107, 18
        %s109 = smul.addr %s108, 4
        %s110 = scalar_lea.vmem %s0, %s109
      $region24: #{_lambda_.5} parent=19 // pred_fallthru
        _
    $region20: #{_lambda_.5} parent=5 // pred_fallthru
      _
    %p111 = scmp.le.s32.totalorder 1, %s8
    %p112 = scmp.lt.s32.totalorder %s8, 3
    %p113 = pnand %p111, %p112
    %p114 = pneg %p113
    // Predicated region
    $region25: #{_lambda_.5} parent=5 // pred_check
      _
    $region26: #{_lambda_.5} parent=5 // pred_check_branch
      %116 = sbr.rel (%p113) target = $region28
    $region27: #{_lambda_.5} parent=5 // pred_region
      %s117 = ssub.s32 %s8, 1
      %p118 = scmp.lt.s32.totalorder %s13, 1
      %s119 = scalar_select %p118, %s13, 1
      %s120 = smul.addr %s119, 18
      %s121 = smul.addr %s120, 4
      %s122 = scalar_lea.vmem %s0, %s121
      %p123 = pneg %p34
      %p124 = pneg %p31
      %p125 = pneg %p55
      %p126 = pneg %p52
      %p127 = pneg %p81
      %p128 = pneg %p78
      %p129 = scmp.lt.s32.totalorder %s13, 1
      %s130 = scalar_select %p129, %s13, 1
      %s131 = smul.addr %s130, 18
      %s132 = smul.addr %s131, 8
      %s133 = scalar_lea.vmem %s2, %s132
      %p134 = scmp.lt.s32.totalorder %s13, 1
      %s135 = scalar_select %p134, %s13, 1
      %s136 = smul.addr %s135, 18
      %s137 = smul.addr %s136, 4
      %s138 = scalar_lea.vmem %s0, %s137
      %p139 = scmp.lt.s32.totalorder %s13, 1
      %s140 = scalar_select %p139, %s13, 1
      %s141 = smul.addr %s140, 18
      %s142 = smul.addr %s141, 8
      %s143 = scalar_lea.vmem %s2, %s142
      %v145 = vld [vmem:[%s138] sm:$0xf]
      %v146 = vld [vmem:[%s138 + $0x4] sm:$0xf]
      %v147 = vld [vmem:[%s138 + $0x8] sm:$0xf]
      %v148 = vld [vmem:[%s138 + $0xc] sm:$0xf]
      %v149 = vld [vmem:[%s138 + $0x10] sm:$0xf]
      %v150 = vld [vmem:[%s138 + $0x14] sm:$0xf]
      %v151 = vld [vmem:[%s138 + $0x18] sm:$0xf]
      %v152 = vld [vmem:[%s138 + $0x1c] sm:$0xf]
      %v153 = vld [vmem:[%s138 + $0x20] sm:$0xf]
      %v154 = vld [vmem:[%s138 + $0x24] sm:$0xf]
      %v155 = vld [vmem:[%s138 + $0x28] sm:$0xf]
      %v156 = vld [vmem:[%s138 + $0x2c] sm:$0xf]
      %v157 = vld [vmem:[%s138 + $0x30] sm:$0xf]
      %v158 = vld [vmem:[%s138 + $0x34] sm:$0xf]
      %v159 = vld [vmem:[%s138 + $0x38] sm:$0xf]
      %v160 = vld [vmem:[%s138 + $0x3c] sm:$0xf]
      %v161 = vld [vmem:[%s138 + $0x40] sm:$0xf]
      %v162 = vld [vmem:[%s138 + $0x44] sm:$0xf]
      %v163 = vld [vmem:[%s1] sm:$0xf]
      %v164 = vld [vmem:[%s1 + $0x4] sm:$0xf]
      %v165 = vld [vmem:[%s1 + $0x8] sm:$0xf]
      %v166 = vld [vmem:[%s1 + $0xc] sm:$0xf]
      %v167 = vld [vmem:[%s1 + $0x10] sm:$0xf]
      %v168 = vld [vmem:[%s1 + $0x14] sm:$0xf]
      %v169 = vld [vmem:[%s1 + $0x18] sm:$0xf]
      %v170 = vld [vmem:[%s1 + $0x1c] sm:$0xf]
      %v189 = vunpack.c.l.b16 %v145
      %v190 = vunpack.c.l.b16 %v146
      %v191 = vunpack.c.l.b16 %v147
      %v192 = vunpack.c.l.b16 %v148
      %v193 = vunpack.c.l.b16 %v149
      %v194 = vunpack.c.l.b16 %v150
      %v195 = vunpack.c.l.b16 %v151
      %v196 = vunpack.c.l.b16 %v152
      %v197 = vunpack.c.l.b16 %v153
      %v198 = vunpack.c.l.b16 %v154
      %v199 = vunpack.c.l.b16 %v155
      %v200 = vunpack.c.l.b16 %v156
      %v201 = vunpack.c.l.b16 %v157
      %v202 = vunpack.c.l.b16 %v158
      %v203 = vunpack.c.l.b16 %v159
      %v204 = vunpack.c.l.b16 %v160
      %v205 = vunpack.c.l.b16 %v161
      %v206 = vunpack.c.l.b16 %v162
      %v207 = vpack.c.b16 %v190, %v189
      %v208 = vpack.c.b16 %v192, %v191
      %v209 = vpack.c.b16 %v194, %v193
      %v210 = vpack.c.b16 %v196, %v195
      %v211 = vpack.c.b16 %v198, %v197
      %v212 = vpack.c.b16 %v200, %v199
      %v213 = vpack.c.b16 %v202, %v201
      %v214 = vpack.c.b16 %v204, %v203
      %v215 = vpack.c.b16 %v206, %v205
      %v224 = vunpack.c.l.b16 %v163
      %v225 = vunpack.c.l.b16 %v164
      %v226 = vunpack.c.l.b16 %v165
      %v227 = vunpack.c.l.b16 %v166
      %v228 = vunpack.c.l.b16 %v167
      %v229 = vunpack.c.l.b16 %v168
      %v230 = vunpack.c.l.b16 %v169
      %v231 = vunpack.c.l.b16 %v170
      %v232 = vpack.c.b16 %v225, %v224
      %v233 = vpack.c.b16 %v227, %v226
      %v234 = vpack.c.b16 %v229, %v228
      %v235 = vpack.c.b16 %v231, %v230
      %vm240 = vcmask 523264
      %v242 = vsel %vm240, %v207, 0
      %v245 = vsel %vm240, %v208, 0
      %v248 = vsel %vm240, %v209, 0
      %v251 = vsel %vm240, %v210, 0
      %v254 = vsel %vm240, %v211, 0
      %v257 = vsel %vm240, %v212, 0
      %v260 = vsel %vm240, %v213, 0
      %v263 = vsel %vm240, %v214, 0
      %v266 = vsel %vm240, %v215, 0
      %268 = vmatpush.bf16.msra.mxu0 0
      %269 = vmatpush.bf16.msra.mxu0 0
      %270 = vmatpush.bf16.msra.mxu0 0
      %271 = vmatpush.bf16.msra.mxu0 0
      %272 = vmatpush.bf16.msra.mxu0 %v235
      %273 = vmatpush.bf16.msra.mxu0 %v234
      %274 = vmatpush.bf16.msra.mxu0 %v233
      %275 = vmatpush.bf16.msra.mxu0 %v232
      %276 = vmatmul.bf16.gmra.mxu0 %v242
      %v277 = vpop.f32.mrf.mxu0
      %v278 = vadd.f32 0.0, %v277
      %v279 = vpop.f32.mrf.mxu0
      %v280 = vadd.f32 0.0, %v279
      %281 = vmatmul.bf16.gmra.mxu0 %v245
      %v282 = vpop.f32.mrf.mxu0
      %v283 = vadd.f32 0.0, %v282
      %v284 = vpop.f32.mrf.mxu0
      %v285 = vadd.f32 0.0, %v284
      %286 = vmatmul.bf16.gmra.mxu0 %v248
      %v287 = vpop.f32.mrf.mxu0
      %v288 = vadd.f32 0.0, %v287
      %v289 = vpop.f32.mrf.mxu0
      %v290 = vadd.f32 0.0, %v289
      %291 = vmatmul.bf16.gmra.mxu0 %v251
      %v292 = vpop.f32.mrf.mxu0
      %v293 = vadd.f32 0.0, %v292
      %v294 = vpop.f32.mrf.mxu0
      %v295 = vadd.f32 0.0, %v294
      %296 = vmatmul.bf16.gmra.mxu0 %v254
      %v297 = vpop.f32.mrf.mxu0
      %v298 = vadd.f32 0.0, %v297
      %v299 = vpop.f32.mrf.mxu0
      %v300 = vadd.f32 0.0, %v299
      %301 = vmatmul.bf16.gmra.mxu0 %v257
      %v302 = vpop.f32.mrf.mxu0
      %v303 = vadd.f32 0.0, %v302
      %v304 = vpop.f32.mrf.mxu0
      %v305 = vadd.f32 0.0, %v304
      %306 = vmatmul.bf16.gmra.mxu0 %v260
      %v307 = vpop.f32.mrf.mxu0
      %v308 = vadd.f32 0.0, %v307
      %v309 = vpop.f32.mrf.mxu0
      %v310 = vadd.f32 0.0, %v309
      %311 = vmatmul.bf16.gmra.mxu0 %v263
      %v312 = vpop.f32.mrf.mxu0
      %v313 = vadd.f32 0.0, %v312
      %v314 = vpop.f32.mrf.mxu0
      %v315 = vadd.f32 0.0, %v314
      %316 = vmatmul.bf16.gmra.mxu0 %v266
      %v317 = vpop.f32.mrf.mxu0
      %v318 = vadd.f32 0.0, %v317
      %v319 = vpop.f32.mrf.mxu0
      %v320 = vadd.f32 0.0, %v319
      %321 = vdwg.mxu0
      %v322 = vsel %vm240, %v278, 0.0
      %v323 = vsel %vm240, %v280, 0.0
      %v324 = vadd.f32 %v322, %v323
      %v325 = vsel %vm240, %v283, 0.0
      %v326 = vadd.f32 %v324, %v325
      %v327 = vsel %vm240, %v285, 0.0
      %v328 = vadd.f32 %v326, %v327
      %v329 = vsel %vm240, %v288, 0.0
      %v330 = vadd.f32 %v328, %v329
      %v331 = vsel %vm240, %v290, 0.0
      %v332 = vadd.f32 %v330, %v331
      %v333 = vsel %vm240, %v293, 0.0
      %v334 = vadd.f32 %v332, %v333
      %v335 = vsel %vm240, %v295, 0.0
      %v336 = vadd.f32 %v334, %v335
      %v337 = vsel %vm240, %v298, 0.0
      %v338 = vadd.f32 %v336, %v337
      %v339 = vsel %vm240, %v300, 0.0
      %v340 = vadd.f32 %v338, %v339
      %v341 = vsel %vm240, %v303, 0.0
      %v342 = vadd.f32 %v340, %v341
      %v343 = vsel %vm240, %v305, 0.0
      %v344 = vadd.f32 %v342, %v343
      %v345 = vsel %vm240, %v308, 0.0
      %v346 = vadd.f32 %v344, %v345
      %v347 = vsel %vm240, %v310, 0.0
      %v348 = vadd.f32 %v346, %v347
      %v349 = vsel %vm240, %v313, 0.0
      %v350 = vadd.f32 %v348, %v349
      %v351 = vsel %vm240, %v315, 0.0
      %v352 = vadd.f32 %v350, %v351
      %v353 = vsel %vm240, %v318, 0.0
      %v354 = vadd.f32 %v352, %v353
      %v355 = vsel %vm240, %v320, 0.0
      %v356 = vadd.f32 %v354, %v355
      %v357 = vrot.slane %v356, 4
      %v358 = vadd.f32 %v356, %v357
      %v359 = vrot.slane %v358, 2
      %v360 = vadd.f32 %v358, %v359
      %v361 = vrot.slane %v360, 1
      %v362 = vadd.f32 %v360, %v361
      %v363 = vrcp.pop 144.0
      %v364 = vmul.f32 144.0, %v363
      %v365 = vsub.f32 1.0, %v364
      %v366 = vmul.f32 %v363, %v365
      %v367 = vadd.f32 %v363, %v366
      %vm368 = vweird.f32 %v363
      %v369 = vsel %vm368, %v363, %v367
      %v370 = vmul.f32 %v362, %v369
      %v371 = vsub.f32 %v278, %v370
      %v372 = vsub.f32 %v280, %v370
      %v373 = vsub.f32 %v283, %v370
      %v374 = vsub.f32 %v285, %v370
      %v375 = vsub.f32 %v288, %v370
      %v376 = vsub.f32 %v290, %v370
      %v377 = vsub.f32 %v293, %v370
      %v378 = vsub.f32 %v295, %v370
      %v379 = vsub.f32 %v298, %v370
      %v380 = vsub.f32 %v300, %v370
      %v381 = vsub.f32 %v303, %v370
      %v382 = vsub.f32 %v305, %v370
      %v383 = vsub.f32 %v308, %v370
      %v384 = vsub.f32 %v310, %v370
      %v385 = vsub.f32 %v313, %v370
      %v386 = vsub.f32 %v315, %v370
      %v387 = vsub.f32 %v318, %v370
      %v388 = vsub.f32 %v320, %v370
      %v389 = vmul.f32 %v371, %v371
      %v390 = vmul.f32 %v372, %v372
      %v391 = vmul.f32 %v373, %v373
      %v392 = vmul.f32 %v374, %v374
      %v393 = vmul.f32 %v375, %v375
      %v394 = vmul.f32 %v376, %v376
      %v395 = vmul.f32 %v377, %v377
      %v396 = vmul.f32 %v378, %v378
      %v397 = vmul.f32 %v379, %v379
      %v398 = vmul.f32 %v380, %v380
      %v399 = vmul.f32 %v381, %v381
      %v400 = vmul.f32 %v382, %v382
      %v401 = vmul.f32 %v383, %v383
      %v402 = vmul.f32 %v384, %v384
      %v403 = vmul.f32 %v385, %v385
      %v404 = vmul.f32 %v386, %v386
      %v405 = vmul.f32 %v387, %v387
      %v406 = vmul.f32 %v388, %v388
      %v407 = vsel %vm240, %v389, 0.0
      %v408 = vsel %vm240, %v390, 0.0
      %v409 = vadd.f32 %v407, %v408
      %v410 = vsel %vm240, %v391, 0.0
      %v411 = vadd.f32 %v409, %v410
      %v412 = vsel %vm240, %v392, 0.0
      %v413 = vadd.f32 %v411, %v412
      %v414 = vsel %vm240, %v393, 0.0
      %v415 = vadd.f32 %v413, %v414
      %v416 = vsel %vm240, %v394, 0.0
      %v417 = vadd.f32 %v415, %v416
      %v418 = vsel %vm240, %v395, 0.0
      %v419 = vadd.f32 %v417, %v418
      %v420 = vsel %vm240, %v396, 0.0
      %v421 = vadd.f32 %v419, %v420
      %v422 = vsel %vm240, %v397, 0.0
      %v423 = vadd.f32 %v421, %v422
      %v424 = vsel %vm240, %v398, 0.0
      %v425 = vadd.f32 %v423, %v424
      %v426 = vsel %vm240, %v399, 0.0
      %v427 = vadd.f32 %v425, %v426
      %v428 = vsel %vm240, %v400, 0.0
      %v429 = vadd.f32 %v427, %v428
      %v430 = vsel %vm240, %v401, 0.0
      %v431 = vadd.f32 %v429, %v430
      %v432 = vsel %vm240, %v402, 0.0
      %v433 = vadd.f32 %v431, %v432
      %v434 = vsel %vm240, %v403, 0.0
      %v435 = vadd.f32 %v433, %v434
      %v436 = vsel %vm240, %v404, 0.0
      %v437 = vadd.f32 %v435, %v436
      %v438 = vsel %vm240, %v405, 0.0
      %v439 = vadd.f32 %v437, %v438
      %v440 = vsel %vm240, %v406, 0.0
      %v441 = vadd.f32 %v439, %v440
      %v442 = vrot.slane %v441, 4
      %v443 = vadd.f32 %v441, %v442
      %v444 = vrot.slane %v443, 2
      %v445 = vadd.f32 %v443, %v444
      %v446 = vrot.slane %v445, 1
      %v447 = vadd.f32 %v445, %v446
      %v448 = vmul.f32 %v447, %v369
      %v449 = vadd.f32 %v448, 1e-05
      %v450 = vrsqrt.pop %v449
      %v451 = vmul.f32 %v450, %v449
      %v452 = vmul.f32 %v451, %v450
      %v453 = vmul.f32 0.5, %v452
      %v454 = vsub.f32 1.5, %v453
      %v455 = vmul.f32 %v450, %v454
      %vm456 = vweird.f32 %v449
      %vm457 = vweird.f32 %v450
      %vm458 = vmor %vm456, %vm457
      %v459 = vsel %vm458, %v450, %v455
      %v460 = vmul.f32 %v371, %v459
      %v461 = vmul.f32 %v372, %v459
      %v462 = vmul.f32 %v373, %v459
      %v463 = vmul.f32 %v374, %v459
      %v464 = vmul.f32 %v375, %v459
      %v465 = vmul.f32 %v376, %v459
      %v466 = vmul.f32 %v377, %v459
      %v467 = vmul.f32 %v378, %v459
      %v468 = vmul.f32 %v379, %v459
      %v469 = vmul.f32 %v380, %v459
      %v470 = vmul.f32 %v381, %v459
      %v471 = vmul.f32 %v382, %v459
      %v472 = vmul.f32 %v383, %v459
      %v473 = vmul.f32 %v384, %v459
      %v474 = vmul.f32 %v385, %v459
      %v475 = vmul.f32 %v386, %v459
      %v476 = vmul.f32 %v387, %v459
      %v477 = vmul.f32 %v388, %v459
      %vm478 = vcmp.ge.f32.partialorder %v460, 0.0
      %vm479 = vcmp.ge.f32.partialorder %v461, 0.0
      %vm480 = vcmp.ge.f32.partialorder %v462, 0.0
      %vm481 = vcmp.ge.f32.partialorder %v463, 0.0
      %vm482 = vcmp.ge.f32.partialorder %v464, 0.0
      %vm483 = vcmp.ge.f32.partialorder %v465, 0.0
      %vm484 = vcmp.ge.f32.partialorder %v466, 0.0
      %vm485 = vcmp.ge.f32.partialorder %v467, 0.0
      %vm486 = vcmp.ge.f32.partialorder %v468, 0.0
      %vm487 = vcmp.ge.f32.partialorder %v469, 0.0
      %vm488 = vcmp.ge.f32.partialorder %v470, 0.0
      %vm489 = vcmp.ge.f32.partialorder %v471, 0.0
      %vm490 = vcmp.ge.f32.partialorder %v472, 0.0
      %vm491 = vcmp.ge.f32.partialorder %v473, 0.0
      %vm492 = vcmp.ge.f32.partialorder %v474, 0.0
      %vm493 = vcmp.ge.f32.partialorder %v475, 0.0
      %vm494 = vcmp.ge.f32.partialorder %v476, 0.0
      %vm495 = vcmp.ge.f32.partialorder %v477, 0.0
      %v496 = vmul.f32 %v460, 0.01
      %v497 = vmul.f32 %v461, 0.01
      %v498 = vmul.f32 %v462, 0.01
      %v499 = vmul.f32 %v463, 0.01
      %v500 = vmul.f32 %v464, 0.01
      %v501 = vmul.f32 %v465, 0.01
      %v502 = vmul.f32 %v466, 0.01
      %v503 = vmul.f32 %v467, 0.01
      %v504 = vmul.f32 %v468, 0.01
      %v505 = vmul.f32 %v469, 0.01
      %v506 = vmul.f32 %v470, 0.01
      %v507 = vmul.f32 %v471, 0.01
      %v508 = vmul.f32 %v472, 0.01
      %v509 = vmul.f32 %v473, 0.01
      %v510 = vmul.f32 %v474, 0.01
      %v511 = vmul.f32 %v475, 0.01
      %v512 = vmul.f32 %v476, 0.01
      %v513 = vmul.f32 %v477, 0.01
      %v514 = vsel %vm478, %v460, %v496
      %v515 = vsel %vm479, %v461, %v497
      %v516 = vsel %vm480, %v462, %v498
      %v517 = vsel %vm481, %v463, %v499
      %v518 = vsel %vm482, %v464, %v500
      %v519 = vsel %vm483, %v465, %v501
      %v520 = vsel %vm484, %v466, %v502
      %v521 = vsel %vm485, %v467, %v503
      %v522 = vsel %vm486, %v468, %v504
      %v523 = vsel %vm487, %v469, %v505
      %v524 = vsel %vm488, %v470, %v506
      %v525 = vsel %vm489, %v471, %v507
      %v526 = vsel %vm490, %v472, %v508
      %v527 = vsel %vm491, %v473, %v509
      %v528 = vsel %vm492, %v474, %v510
      %v529 = vsel %vm493, %v475, %v511
      %v530 = vsel %vm494, %v476, %v512
      %v531 = vsel %vm495, %v477, %v513
      %532 = vst.msk [vmem:[%s143] sm:$0xff] %vm240, %v514
      %533 = vst.msk [vmem:[%s143 + $0x8] sm:$0xff] %vm240, %v515
      %534 = vst.msk [vmem:[%s143 + $0x10] sm:$0xff] %vm240, %v516
      %535 = vst.msk [vmem:[%s143 + $0x18] sm:$0xff] %vm240, %v517
      %536 = vst.msk [vmem:[%s143 + $0x20] sm:$0xff] %vm240, %v518
      %537 = vst.msk [vmem:[%s143 + $0x28] sm:$0xff] %vm240, %v519
      %538 = vst.msk [vmem:[%s143 + $0x30] sm:$0xff] %vm240, %v520
      %539 = vst.msk [vmem:[%s143 + $0x38] sm:$0xff] %vm240, %v521
      %540 = vst.msk [vmem:[%s143 + $0x40] sm:$0xff] %vm240, %v522
      %541 = vst.msk [vmem:[%s143 + $0x48] sm:$0xff] %vm240, %v523
      %542 = vst.msk [vmem:[%s143 + $0x50] sm:$0xff] %vm240, %v524
      %543 = vst.msk [vmem:[%s143 + $0x58] sm:$0xff] %vm240, %v525
      %544 = vst.msk [vmem:[%s143 + $0x60] sm:$0xff] %vm240, %v526
      %545 = vst.msk [vmem:[%s143 + $0x68] sm:$0xff] %vm240, %v527
      %546 = vst.msk [vmem:[%s143 + $0x70] sm:$0xff] %vm240, %v528
      %547 = vst.msk [vmem:[%s143 + $0x78] sm:$0xff] %vm240, %v529
      %548 = vst.msk [vmem:[%s143 + $0x80] sm:$0xff] %vm240, %v530
      %549 = vst.msk [vmem:[%s143 + $0x88] sm:$0xff] %vm240, %v531
      %p550 = scmp.lt.s32.totalorder %s13, 1
      %s551 = scalar_select %p550, %s13, 1
      %s552 = smul.addr %s551, 18
      %s553 = smul.addr %s552, 8
      %s554 = scalar_lea.vmem %s2, %s553
      // Predicated region
      $region29: #{_lambda_.5} parent=27 // pred_check
        %p555 = pneg %p78
      $region30: #{_lambda_.5} parent=27 // pred_check_branch
        %557 = sbr.rel (%p555) target = $region32
      $region31: #{_lambda_.5} parent=27 // pred_region
        _
      $region32: #{_lambda_.5} parent=27 // pred_fallthru
        _
    $region28: #{_lambda_.5} parent=5 // pred_fallthru
      _
    %p558 = scmp.le.s32.totalorder 2, %s8
    // Predicated region
    $region33: #{_lambda_.5} parent=5 // pred_check
      %p559 = pneg %p558
    $region34: #{_lambda_.5} parent=5 // pred_check_branch
      %561 = sbr.rel (%p559) target = $region36
    $region35: #{_lambda_.5} parent=5 // pred_region
      %s562 = ssub.s32 %s8, 2
      // Predicated region
      $region37: #{_lambda_.5} parent=35 // pred_check
        %p563 = pneg %p84
      $region38: #{_lambda_.5} parent=35 // pred_check_branch
        %565 = sbr.rel (%p563) target = $region40
      $region39: #{_lambda_.5} parent=35 // pred_region
        %p566 = scmp.lt.s32.totalorder %s14, 1
        %s567 = scalar_select %p566, %s14, 1
        %s568 = smul.addr %s567, 18
        %s569 = smul.addr %s568, 8
        %s570 = scalar_lea.vmem %s2, %s569
      $region40: #{_lambda_.5} parent=35 // pred_fallthru
        _
    $region36: #{_lambda_.5} parent=5 // pred_fallthru
      _
  $region6: #{_lambda_.5} parent=0 // loop_footer
    %s12 = sadd.s32 1, %s8
  $region7: #{_lambda_.5} parent=0 // loop_footer_branch
    %7 = sbr.rel target = $region3
  $region8: #{_lambda_.5} parent=0 // loop_exit
    _

// kernel: reverse.2
$region0: #{reverse.2}
  #allocation0 [shape = 's32[1]{0}', space=sflag, size = 0x4, scoped, tag = 'scoped memory for reverse.2']
  %s0 = inlined_call_operand.vmem [shape: f32[2,32,16,7], index: 0, kind: input, shape index: {}]
  %s1 = inlined_call_operand.vmem [shape: f32[2,32,16,7], index: 1, kind: output, shape index: {}]
  %s2 = scalar_lea.vmem %s0, 96
  %v3 = vld [vmem:[%s2] sm:$0xff]
  %4 = vst [vmem:[%s1] sm:$0xff] %v3
  %s5 = scalar_lea.vmem %s0, 208
  %v6 = vld [vmem:[%s5] sm:$0xff]
  %s7 = scalar_lea.vmem %s1, 112
  %8 = vst [vmem:[%s7] sm:$0xff] %v6
  %s9 = scalar_lea.vmem %s0, 80
  %v10 = vld [vmem:[%s9] sm:$0xff]
  %s11 = scalar_lea.vmem %s1, 16
  %12 = vst [vmem:[%s11] sm:$0xff] %v10
  %s13 = scalar_lea.vmem %s0, 192
  %v14 = vld [vmem:[%s13] sm:$0xff]
  %s15 = scalar_lea.vmem %s1, 128
  %16 = vst [vmem:[%s15] sm:$0xff] %v14
  %s17 = scalar_lea.vmem %s0, 64
  %v18 = vld [vmem:[%s17] sm:$0xff]
  %s19 = scalar_lea.vmem %s1, 32
  %20 = vst [vmem:[%s19] sm:$0xff] %v18
  %s21 = scalar_lea.vmem %s0, 176
  %v22 = vld [vmem:[%s21] sm:$0xff]
  %s23 = scalar_lea.vmem %s1, 144
  %24 = vst [vmem:[%s23] sm:$0xff] %v22
  %s25 = scalar_lea.vmem %s0, 48
  %v26 = vld [vmem:[%s25] sm:$0xff]
  %s27 = scalar_lea.vmem %s1, 48
  %28 = vst [vmem:[%s27] sm:$0xff] %v26
  %s29 = scalar_lea.vmem %s0, 160
  %v30 = vld [vmem:[%s29] sm:$0xff]
  %s31 = scalar_lea.vmem %s1, 160
  %32 = vst [vmem:[%s31] sm:$0xff] %v30
  %s33 = scalar_lea.vmem %s0, 32
  %v34 = vld [vmem:[%s33] sm:$0xff]
  %s35 = scalar_lea.vmem %s1, 64
  %36 = vst [vmem:[%s35] sm:$0xff] %v34
  %s37 = scalar_lea.vmem %s0, 144
  %v38 = vld [vmem:[%s37] sm:$0xff]
  %s39 = scalar_lea.vmem %s1, 176
  %40 = vst [vmem:[%s39] sm:$0xff] %v38
  %s41 = scalar_lea.vmem %s0, 16
  %v42 = vld [vmem:[%s41] sm:$0xff]
  %s43 = scalar_lea.vmem %s1, 80
  %44 = vst [vmem:[%s43] sm:$0xff] %v42
  %s45 = scalar_lea.vmem %s0, 128
  %v46 = vld [vmem:[%s45] sm:$0xff]
  %s47 = scalar_lea.vmem %s1, 192
  %48 = vst [vmem:[%s47] sm:$0xff] %v46
  %v49 = vld [vmem:[%s0] sm:$0xff]
  %s50 = scalar_lea.vmem %s1, 96
  %51 = vst [vmem:[%s50] sm:$0xff] %v49
  %s52 = scalar_lea.vmem %s0, 112
  %v53 = vld [vmem:[%s52] sm:$0xff]
  %s54 = scalar_lea.vmem %s1, 208
  %55 = vst [vmem:[%s54] sm:$0xff] %v53
  %s56 = scalar_lea.vmem %s0, 104
  %v57 = vld [vmem:[%s56] sm:$0xff]
  %s58 = scalar_lea.vmem %s1, 8
  %59 = vst [vmem:[%s58] sm:$0xff] %v57
  %s60 = scalar_lea.vmem %s0, 216
  %v61 = vld [vmem:[%s60] sm:$0xff]
  %s62 = scalar_lea.vmem %s1, 120
  %63 = vst [vmem:[%s62] sm:$0xff] %v61
  %s64 = scalar_lea.vmem %s0, 88
  %v65 = vld [vmem:[%s64] sm:$0xff]
  %s66 = scalar_lea.vmem %s1, 24
  %67 = vst [vmem:[%s66] sm:$0xff] %v65
  %s68 = scalar_lea.vmem %s0, 200
  %v69 = vld [vmem:[%s68] sm:$0xff]
  %s70 = scalar_lea.vmem %s1, 136
  %71 = vst [vmem:[%s70] sm:$0xff] %v69
  %s72 = scalar_lea.vmem %s0, 72
  %v73 = vld [vmem:[%s72] sm:$0xff]
  %s74 = scalar_lea.vmem %s1, 40
  %75 = vst [vmem:[%s74] sm:$0xff] %v73
  %s76 = scalar_lea.vmem %s0, 184
  %v77 = vld [vmem:[%s76] sm:$0xff]
  %s78 = scalar_lea.vmem %s1, 152
  %79 = vst [vmem:[%s78] sm:$0xff] %v77
  %s80 = scalar_lea.vmem %s0, 56
  %v81 = vld [vmem:[%s80] sm:$0xff]
  %s82 = scalar_lea.vmem %s1, 56
  %83 = vst [vmem:[%s82] sm:$0xff] %v81
  %s84 = scalar_lea.vmem %s0, 168
  %v85 = vld [vmem:[%s84] sm:$0xff]
  %s86 = scalar_lea.vmem %s1, 168
  %87 = vst [vmem:[%s86] sm:$0xff] %v85
  %s88 = scalar_lea.vmem %s0, 40
  %v89 = vld [vmem:[%s88] sm:$0xff]
  %s90 = scalar_lea.vmem %s1, 72
  %91 = vst [vmem:[%s90] sm:$0xff] %v89
  %s92 = scalar_lea.vmem %s0, 152
  %v93 = vld [vmem:[%s92] sm:$0xff]
  %s94 = scalar_lea.vmem %s1, 184
  %95 = vst [vmem:[%s94] sm:$0xff] %v93
  %s96 = scalar_lea.vmem %s0, 24
  %v97 = vld [vmem:[%s96] sm:$0xff]
  %s98 = scalar_lea.vmem %s1, 88
  %99 = vst [vmem:[%s98] sm:$0xff] %v97
  %s100 = scalar_lea.vmem %s0, 136
  %v101 = vld [vmem:[%s100] sm:$0xff]
  %s102 = scalar_lea.vmem %s1, 200
  %103 = vst [vmem:[%s102] sm:$0xff] %v101
  %s104 = scalar_lea.vmem %s0, 8
  %v105 = vld [vmem:[%s104] sm:$0xff]
  %s106 = scalar_lea.vmem %s1, 104
  %107 = vst [vmem:[%s106] sm:$0xff] %v105
  %s108 = scalar_lea.vmem %s0, 120
  %v109 = vld [vmem:[%s108] sm:$0xff]
  %s110 = scalar_lea.vmem %s1, 216
  %111 = vst [vmem:[%s110] sm:$0xff] %v109

// kernel: _lambda_.7
$region0: #{_lambda_.7}
  #allocation0 [shape = 'u32[]', space=smem, size = 0x4, offset = 0x4, fixed_abs, tag = 'smem constant byte address 0x4 - core index']
  #allocation1 [shape = 'u32[72,128]{1,0:T(1,128)}', space=vmem, size = 0x9000, scoped, tag = 'internal scratch']
  %s0 = inlined_call_operand.vmem [shape: bf16[512,32], index: 0, kind: input, shape index: {}]
  %s1 = inlined_call_operand.vmem [shape: bf16[512,32], index: 1, kind: input, shape index: {}]
  %s2 = inlined_call_operand.vmem [shape: bf16[512,32], index: 2, kind: input, shape index: {}]
  %s3 = inlined_call_operand.vmem [shape: bf16[32,64], index: 3, kind: input, shape index: {}]
  %s4 = inlined_call_operand.hbm [shape: f32[512,64], index: 4, kind: output, shape index: {}]
  %s5 = sld [smem:[#allocation0]]
  $region49: #{_lambda_.7} parent=0
    _
  %s7 = ssub.s32 1, %s5
  %s8 = scalar_select 0, %s7, %s5
  $region1: #{_lambda_.7} parent=0
    #allocation2 [shape = 'u8[262144]{0}', space=vmem, size = 0x40000, scoped, tag = 'output window, operand 0']
    #allocation3 [shape = 's32[2]{0}', space=sflag, size = 0x8, scoped, tag = 'scoped memory for _lambda_.7']
    %9 = vsyncpa [#allocation3], 0
    %s10 = scalar_lea.sflag [#allocation3], 1
    %11 = vsyncpa %s10, 0
    loop: start=0, step=1, limit=4
    $region2: #{_lambda_.7} parent=1 // loop_pre_header
      _
    $region3: #{_lambda_.7} parent=1 // loop_header
      %s13 = sphi 0, %s17
      %p14 = scmp.ge.s32.totalorder %s13, 4
      %s23 = sphi 0, %s25
      %s26 = sphi 0, %s23
      %s27 = sphi 0, %s26
      %s43 = sphi 0, %s27
      %s49 = sphi 0, %s51
      %s52 = sphi 0, %s49
      %s53 = sphi 0, %s52
      %s69 = sphi 0, %s53
      %s75 = sphi 0, %s77
      %s78 = sphi 0, %s75
      %s79 = sphi 0, %s78
      %s95 = sphi 0, %s79
      %s99 = sphi 0, %s99
      %s101 = sphi 0, %s99
      %s102 = sphi 0, %s101
      %s116 = sphi 0, %s102
      %s122 = sphi 0, %s124
      %s125 = sphi 0, %s122
      %s126 = sphi 0, %s125
      %s142 = sphi 0, %s126
    $region4: #{_lambda_.7} parent=1 // loop_header_branch
      %16 = sbr.rel (%p14) target = $region8
    $region5: #{_lambda_.7} parent=1 // loop_body
      %s18 = ssub.s32 %s13, 1
      %s19 = ssub.s32 %s13, 2
      %s20 = sadd.s32 %s13, 1
      %s21 = ssub.s32 %s13, %s20
      %p22 = scmp.eq.s32.totalorder %s21, 0
      %s24 = sadd.s32 %s23, 1
      %s25 = scalar_select %p22, %s23, %s24
      %p28 = pneg %p22
      %p29 = scmp.eq.s32.totalorder %s13, 1
      %p30 = por %p28, %p29
      %p31 = scmp.ne.s32.totalorder %s23, %s26
      %p32 = scmp.eq.s32.totalorder %s13, 0
      %p33 = por %p31, %p32
      %p34 = scmp.ne.s32.totalorder %s23, %s26
      %p35 = scmp.eq.s32.totalorder %s18, 1
      %p36 = por %p34, %p35
      %p37 = scmp.ne.s32.totalorder %s26, %s27
      %p38 = scmp.eq.s32.totalorder %s18, 0
      %p39 = por %p37, %p38
      %p40 = scmp.ne.s32.totalorder %s26, %s27
      %p41 = scmp.eq.s32.totalorder %s19, 1
      %p42 = por %p40, %p41
      %p44 = scmp.ne.s32.totalorder %s27, %s43
      %p45 = scmp.eq.s32.totalorder %s19, 0
      %p46 = por %p44, %p45
      %s47 = ssub.s32 %s13, %s20
      %p48 = scmp.eq.s32.totalorder %s47, 0
      %s50 = sadd.s32 %s49, 1
      %s51 = scalar_select %p48, %s49, %s50
      %p54 = pneg %p48
      %p55 = scmp.eq.s32.totalorder %s13, 1
      %p56 = por %p54, %p55
      %p57 = scmp.ne.s32.totalorder %s49, %s52
      %p58 = scmp.eq.s32.totalorder %s13, 0
      %p59 = por %p57, %p58
      %p60 = scmp.ne.s32.totalorder %s49, %s52
      %p61 = scmp.eq.s32.totalorder %s18, 1
      %p62 = por %p60, %p61
      %p63 = scmp.ne.s32.totalorder %s52, %s53
      %p64 = scmp.eq.s32.totalorder %s18, 0
      %p65 = por %p63, %p64
      %p66 = scmp.ne.s32.totalorder %s52, %s53
      %p67 = scmp.eq.s32.totalorder %s19, 1
      %p68 = por %p66, %p67
      %p70 = scmp.ne.s32.totalorder %s53, %s69
      %p71 = scmp.eq.s32.totalorder %s19, 0
      %p72 = por %p70, %p71
      %s73 = ssub.s32 %s13, %s20
      %p74 = scmp.eq.s32.totalorder %s73, 0
      %s76 = sadd.s32 %s75, 1
      %s77 = scalar_select %p74, %s75, %s76
      %p80 = pneg %p74
      %p81 = scmp.eq.s32.totalorder %s13, 1
      %p82 = por %p80, %p81
      %p83 = scmp.ne.s32.totalorder %s75, %s78
      %p84 = scmp.eq.s32.totalorder %s13, 0
      %p85 = por %p83, %p84
      %p86 = scmp.ne.s32.totalorder %s75, %s78
      %p87 = scmp.eq.s32.totalorder %s18, 1
      %p88 = por %p86, %p87
      %p89 = scmp.ne.s32.totalorder %s78, %s79
      %p90 = scmp.eq.s32.totalorder %s18, 0
      %p91 = por %p89, %p90
      %p92 = scmp.ne.s32.totalorder %s78, %s79
      %p93 = scmp.eq.s32.totalorder %s19, 1
      %p94 = por %p92, %p93
      %p96 = scmp.ne.s32.totalorder %s79, %s95
      %p97 = scmp.eq.s32.totalorder %s19, 0
      %p98 = por %p96, %p97
      %s100 = sadd.s32 %s99, 1
      %p103 = scmp.eq.s32.totalorder %s13, 1
      %p104 = scmp.ne.s32.totalorder %s99, %s101
      %p105 = scmp.eq.s32.totalorder %s13, 0
      %p106 = por %p104, %p105
      %p107 = scmp.ne.s32.totalorder %s99, %s101
      %p108 = scmp.eq.s32.totalorder %s18, 1
      %p109 = por %p107, %p108
      %p110 = scmp.ne.s32.totalorder %s101, %s102
      %p111 = scmp.eq.s32.totalorder %s18, 0
      %p112 = por %p110, %p111
      %p113 = scmp.ne.s32.totalorder %s101, %s102
      %p114 = scmp.eq.s32.totalorder %s19, 1
      %p115 = por %p113, %p114
      %p117 = scmp.ne.s32.totalorder %s102, %s116
      %p118 = scmp.eq.s32.totalorder %s19, 0
      %p119 = por %p117, %p118
      %s120 = ssub.s32 %s13, %s20
      %p121 = scmp.eq.s32.totalorder %s120, 0
      %s123 = sadd.s32 %s122, 1
      %s124 = scalar_select %p121, %s122, %s123
      %p127 = pneg %p121
      %p128 = scmp.eq.s32.totalorder %s13, 1
      %p129 = por %p127, %p128
      %p130 = scmp.ne.s32.totalorder %s122, %s125
      %p131 = scmp.eq.s32.totalorder %s13, 0
      %p132 = por %p130, %p131
      %p133 = scmp.ne.s32.totalorder %s122, %s125
      %p134 = scmp.eq.s32.totalorder %s18, 1
      %p135 = por %p133, %p134
      %p136 = scmp.ne.s32.totalorder %s125, %s126
      %p137 = scmp.eq.s32.totalorder %s18, 0
      %p138 = por %p136, %p137
      %p139 = scmp.ne.s32.totalorder %s125, %s126
      %p140 = scmp.eq.s32.totalorder %s19, 1
      %p141 = por %p139, %p140
      %p143 = scmp.ne.s32.totalorder %s126, %s142
      %p144 = scmp.eq.s32.totalorder %s19, 0
      %p145 = por %p143, %p144
      %p146 = scmp.le.s32.totalorder 1, %s13
      %p147 = scmp.lt.s32.totalorder %s13, 3
      %p148 = pnand %p146, %p147
      %p149 = pneg %p148
      // Predicated region
      $region9: #{_lambda_.7} parent=5 // pred_check
        _
      $region10: #{_lambda_.7} parent=5 // pred_check_branch
        %151 = sbr.rel (%p148) target = $region12
      $region11: #{_lambda_.7} parent=5 // pred_region
        %s152 = ssub.s32 %s13, 1
        // Predicated region
        $region13: #{_lambda_.7} parent=11 // pred_check
          %p153 = pneg %p112
        $region14: #{_lambda_.7} parent=11 // pred_check_branch
          %155 = sbr.rel (%p153) target = $region16
        $region15: #{_lambda_.7} parent=11 // pred_region
          _
        $region16: #{_lambda_.7} parent=11 // pred_fallthru
          _
      $region12: #{_lambda_.7} parent=5 // pred_fallthru
        _
      %p156 = scmp.lt.s32.totalorder %s13, 2
      // Predicated region
      $region17: #{_lambda_.7} parent=5 // pred_check
        %p157 = pneg %p156
      $region18: #{_lambda_.7} parent=5 // pred_check_branch
        %159 = sbr.rel (%p157) target = $region20
      $region19: #{_lambda_.7} parent=5 // pred_region
        // Predicated region
        $region21: #{_lambda_.7} parent=19 // pred_check
          %p160 = pneg %p33
        $region22: #{_lambda_.7} parent=19 // pred_check_branch
          %162 = sbr.rel (%p160) target = $region24
        $region23: #{_lambda_.7} parent=19 // pred_region
          %s163 = smul.u32 32, %s13
          %p164 = scmp.lt.s32.totalorder %s163, 63
          %s165 = scalar_select %p164, %s163, 63
          %s166 = smul.addr %s165, 4
          %s167 = scalar_lea.vmem %s0, %s166
          %s168 = smul.u32 32, %s13
        $region24: #{_lambda_.7} parent=19 // pred_fallthru
          _
        // Predicated region
        $region25: #{_lambda_.7} parent=19 // pred_check
          %p169 = pneg %p59
        $region26: #{_lambda_.7} parent=19 // pred_check_branch
          %171 = sbr.rel (%p169) target = $region28
        $region27: #{_lambda_.7} parent=19 // pred_region
          %s172 = smul.u32 32, %s13
          %p173 = scmp.lt.s32.totalorder %s172, 63
          %s174 = scalar_select %p173, %s172, 63
          %s175 = smul.addr %s174, 4
          %s176 = scalar_lea.vmem %s1, %s175
          %s177 = smul.u32 32, %s13
        $region28: #{_lambda_.7} parent=19 // pred_fallthru
          _
        // Predicated region
        $region29: #{_lambda_.7} parent=19 // pred_check
          %p178 = pneg %p85
        $region30: #{_lambda_.7} parent=19 // pred_check_branch
          %180 = sbr.rel (%p178) target = $region32
        $region31: #{_lambda_.7} parent=19 // pred_region
          %s181 = smul.u32 32, %s13
          %p182 = scmp.lt.s32.totalorder %s181, 63
          %s183 = scalar_select %p182, %s181, 63
          %s184 = smul.addr %s183, 4
          %s185 = scalar_lea.vmem %s2, %s184
          %s186 = smul.u32 32, %s13
        $region32: #{_lambda_.7} parent=19 // pred_fallthru
          _
      $region20: #{_lambda_.7} parent=5 // pred_fallthru
        _
      %p187 = scmp.le.s32.totalorder 1, %s13
      %p188 = scmp.lt.s32.totalorder %s13, 3
      %p189 = pnand %p187, %p188
      %p190 = pneg %p189
      // Predicated region
      $region33: #{_lambda_.7} parent=5 // pred_check
        _
      $region34: #{_lambda_.7} parent=5 // pred_check_branch
        %192 = sbr.rel (%p189) target = $region36
      $region35: #{_lambda_.7} parent=5 // pred_region
        %s193 = ssub.s32 %s13, 1
        %s194 = smul.u32 32, %s18
        %p195 = scmp.lt.s32.totalorder %s194, 63
        %s196 = scalar_select %p195, %s194, 63
        %s197 = smul.addr %s196, 4
        %s198 = scalar_lea.vmem %s0, %s197
        %p199 = pneg %p39
        %p200 = pneg %p36
        %s201 = smul.u32 32, %s18
        %p202 = scmp.lt.s32.totalorder %s201, 63
        %s203 = scalar_select %p202, %s201, 63
        %s204 = smul.addr %s203, 4
        %s205 = scalar_lea.vmem %s1, %s204
        %p206 = pneg %p65
        %p207 = pneg %p62
        %s208 = smul.u32 32, %s18
        %p209 = scmp.lt.s32.totalorder %s208, 63
        %s210 = scalar_select %p209, %s208, 63
        %s211 = smul.addr %s210, 4
        %s212 = scalar_lea.vmem %s2, %s211
        %p213 = pneg %p91
        %p214 = pneg %p88
        %p215 = pneg %p112
        %p216 = pneg %p109
        %p217 = pneg %p138
        %p218 = pneg %p135
        %s219 = sand.u32 %s125, 1
        %s220 = scalar_lea.sflag [#allocation3], %s219
        %s221 = sand.u32 %s125, 1
        %s222 = smul.addr %s221, 256
        %s223 = scalar_lea.vmem [#allocation2], %s222
        %s224 = smul.u32 32, %s18
        %p225 = scmp.lt.s32.totalorder %s224, 63
        %s226 = scalar_select %p225, %s224, 63
        %s227 = smul.addr %s226, 4
        %s228 = scalar_lea.vmem %s0, %s227
        %s229 = smul.u32 32, %s18
        %s230 = smul.u32 32, %s18
        %p231 = scmp.lt.s32.totalorder %s230, 63
        %s232 = scalar_select %p231, %s230, 63
        %s233 = smul.addr %s232, 4
        %s234 = scalar_lea.vmem %s1, %s233
        %s235 = smul.u32 32, %s18
        %s236 = smul.u32 32, %s18
        %p237 = scmp.lt.s32.totalorder %s236, 63
        %s238 = scalar_select %p237, %s236, 63
        %s239 = smul.addr %s238, 4
        %s240 = scalar_lea.vmem %s2, %s239
        %s241 = smul.u32 32, %s18
        %s242 = smul.u32 32, %s18
        %v244 = vld [vmem:[%s228] sm:$0xf]
        %v245 = vld [vmem:[%s228 + $0x4] sm:$0xf]
        %v246 = vld [vmem:[%s228 + $0x8] sm:$0xf]
        %v247 = vld [vmem:[%s228 + $0xc] sm:$0xf]
        %v248 = vld [vmem:[%s228 + $0x10] sm:$0xf]
        %v249 = vld [vmem:[%s228 + $0x14] sm:$0xf]
        %v250 = vld [vmem:[%s228 + $0x18] sm:$0xf]
        %v251 = vld [vmem:[%s228 + $0x1c] sm:$0xf]
        %v252 = vld [vmem:[%s228 + $0x20] sm:$0xf]
        %v253 = vld [vmem:[%s228 + $0x24] sm:$0xf]
        %v254 = vld [vmem:[%s228 + $0x28] sm:$0xf]
        %v255 = vld [vmem:[%s228 + $0x2c] sm:$0xf]
        %v256 = vld [vmem:[%s228 + $0x30] sm:$0xf]
        %v257 = vld [vmem:[%s228 + $0x34] sm:$0xf]
        %v258 = vld [vmem:[%s228 + $0x38] sm:$0xf]
        %v259 = vld [vmem:[%s228 + $0x3c] sm:$0xf]
        %v260 = vld [vmem:[%s228 + $0x40] sm:$0xf]
        %v261 = vld [vmem:[%s228 + $0x44] sm:$0xf]
        %v262 = vld [vmem:[%s228 + $0x48] sm:$0xf]
        %v263 = vld [vmem:[%s228 + $0x4c] sm:$0xf]
        %v264 = vld [vmem:[%s228 + $0x50] sm:$0xf]
        %v265 = vld [vmem:[%s228 + $0x54] sm:$0xf]
        %v266 = vld [vmem:[%s228 + $0x58] sm:$0xf]
        %v267 = vld [vmem:[%s228 + $0x5c] sm:$0xf]
        %v268 = vld [vmem:[%s228 + $0x60] sm:$0xf]
        %v269 = vld [vmem:[%s228 + $0x64] sm:$0xf]
        %v270 = vld [vmem:[%s228 + $0x68] sm:$0xf]
        %v271 = vld [vmem:[%s228 + $0x6c] sm:$0xf]
        %v272 = vld [vmem:[%s228 + $0x70] sm:$0xf]
        %v273 = vld [vmem:[%s228 + $0x74] sm:$0xf]
        %v274 = vld [vmem:[%s228 + $0x78] sm:$0xf]
        %v275 = vld [vmem:[%s228 + $0x7c] sm:$0xf]
        %v276 = vunpack.c.l.bf16 %v244
        %v277 = vunpack.c.l.bf16 %v245
        %v278 = vunpack.c.l.bf16 %v246
        %v279 = vunpack.c.l.bf16 %v247
        %v280 = vunpack.c.l.bf16 %v248
        %v281 = vunpack.c.l.bf16 %v249
        %v282 = vunpack.c.l.bf16 %v250
        %v283 = vunpack.c.l.bf16 %v251
        %v284 = vunpack.c.l.bf16 %v252
        %v285 = vunpack.c.l.bf16 %v253
        %v286 = vunpack.c.l.bf16 %v254
        %v287 = vunpack.c.l.bf16 %v255
        %v288 = vunpack.c.l.bf16 %v256
        %v289 = vunpack.c.l.bf16 %v257
        %v290 = vunpack.c.l.bf16 %v258
        %v291 = vunpack.c.l.bf16 %v259
        %v292 = vunpack.c.l.bf16 %v260
        %v293 = vunpack.c.l.bf16 %v261
        %v294 = vunpack.c.l.bf16 %v262
        %v295 = vunpack.c.l.bf16 %v263
        %v296 = vunpack.c.l.bf16 %v264
        %v297 = vunpack.c.l.bf16 %v265
        %v298 = vunpack.c.l.bf16 %v266
        %v299 = vunpack.c.l.bf16 %v267
        %v300 = vunpack.c.l.bf16 %v268
        %v301 = vunpack.c.l.bf16 %v269
        %v302 = vunpack.c.l.bf16 %v270
        %v303 = vunpack.c.l.bf16 %v271
        %v304 = vunpack.c.l.bf16 %v272
        %v305 = vunpack.c.l.bf16 %v273
        %v306 = vunpack.c.l.bf16 %v274
        %v307 = vunpack.c.l.bf16 %v275
        %v308 = vld [vmem:[%s234] sm:$0xf]
        %v309 = vld [vmem:[%s234 + $0x4] sm:$0xf]
        %v310 = vld [vmem:[%s234 + $0x8] sm:$0xf]
        %v311 = vld [vmem:[%s234 + $0xc] sm:$0xf]
        %v312 = vld [vmem:[%s234 + $0x10] sm:$0xf]
        %v313 = vld [vmem:[%s234 + $0x14] sm:$0xf]
        %v314 = vld [vmem:[%s234 + $0x18] sm:$0xf]
        %v315 = vld [vmem:[%s234 + $0x1c] sm:$0xf]
        %v316 = vld [vmem:[%s234 + $0x20] sm:$0xf]
        %v317 = vld [vmem:[%s234 + $0x24] sm:$0xf]
        %v318 = vld [vmem:[%s234 + $0x28] sm:$0xf]
        %v319 = vld [vmem:[%s234 + $0x2c] sm:$0xf]
        %v320 = vld [vmem:[%s234 + $0x30] sm:$0xf]
        %v321 = vld [vmem:[%s234 + $0x34] sm:$0xf]
        %v322 = vld [vmem:[%s234 + $0x38] sm:$0xf]
        %v323 = vld [vmem:[%s234 + $0x3c] sm:$0xf]
        %v324 = vld [vmem:[%s234 + $0x40] sm:$0xf]
        %v325 = vld [vmem:[%s234 + $0x44] sm:$0xf]
        %v326 = vld [vmem:[%s234 + $0x48] sm:$0xf]
        %v327 = vld [vmem:[%s234 + $0x4c] sm:$0xf]
        %v328 = vld [vmem:[%s234 + $0x50] sm:$0xf]
        %v329 = vld [vmem:[%s234 + $0x54] sm:$0xf]
        %v330 = vld [vmem:[%s234 + $0x58] sm:$0xf]
        %v331 = vld [vmem:[%s234 + $0x5c] sm:$0xf]
        %v332 = vld [vmem:[%s234 + $0x60] sm:$0xf]
        %v333 = vld [vmem:[%s234 + $0x64] sm:$0xf]
        %v334 = vld [vmem:[%s234 + $0x68] sm:$0xf]
        %v335 = vld [vmem:[%s234 + $0x6c] sm:$0xf]
        %v336 = vld [vmem:[%s234 + $0x70] sm:$0xf]
        %v337 = vld [vmem:[%s234 + $0x74] sm:$0xf]
        %v338 = vld [vmem:[%s234 + $0x78] sm:$0xf]
        %v339 = vld [vmem:[%s234 + $0x7c] sm:$0xf]
        %v340 = vunpack.c.l.bf16 %v308
        %v341 = vunpack.c.l.bf16 %v309
        %v342 = vunpack.c.l.bf16 %v310
        %v343 = vunpack.c.l.bf16 %v311
        %v344 = vunpack.c.l.bf16 %v312
        %v345 = vunpack.c.l.bf16 %v313
        %v346 = vunpack.c.l.bf16 %v314
        %v347 = vunpack.c.l.bf16 %v315
        %v348 = vunpack.c.l.bf16 %v316
        %v349 = vunpack.c.l.bf16 %v317
        %v350 = vunpack.c.l.bf16 %v318
        %v351 = vunpack.c.l.bf16 %v319
        %v352 = vunpack.c.l.bf16 %v320
        %v353 = vunpack.c.l.bf16 %v321
        %v354 = vunpack.c.l.bf16 %v322
        %v355 = vunpack.c.l.bf16 %v323
        %v356 = vunpack.c.l.bf16 %v324
        %v357 = vunpack.c.l.bf16 %v325
        %v358 = vunpack.c.l.bf16 %v326
        %v359 = vunpack.c.l.bf16 %v327
        %v360 = vunpack.c.l.bf16 %v328
        %v361 = vunpack.c.l.bf16 %v329
        %v362 = vunpack.c.l.bf16 %v330
        %v363 = vunpack.c.l.bf16 %v331
        %v364 = vunpack.c.l.bf16 %v332
        %v365 = vunpack.c.l.bf16 %v333
        %v366 = vunpack.c.l.bf16 %v334
        %v367 = vunpack.c.l.bf16 %v335
        %v368 = vunpack.c.l.bf16 %v336
        %v369 = vunpack.c.l.bf16 %v337
        %v370 = vunpack.c.l.bf16 %v338
        %v371 = vunpack.c.l.bf16 %v339
        %v372 = vadd.f32 %v276, %v340
        %v373 = vadd.f32 %v277, %v341
        %v374 = vadd.f32 %v278, %v342
        %v375 = vadd.f32 %v279, %v343
        %v376 = vadd.f32 %v280, %v344
        %v377 = vadd.f32 %v281, %v345
        %v378 = vadd.f32 %v282, %v346
        %v379 = vadd.f32 %v283, %v347
        %v380 = vadd.f32 %v284, %v348
        %v381 = vadd.f32 %v285, %v349
        %v382 = vadd.f32 %v286, %v350
        %v383 = vadd.f32 %v287, %v351
        %v384 = vadd.f32 %v288, %v352
        %v385 = vadd.f32 %v289, %v353
        %v386 = vadd.f32 %v290, %v354
        %v387 = vadd.f32 %v291, %v355
        %v388 = vadd.f32 %v292, %v356
        %v389 = vadd.f32 %v293, %v357
        %v390 = vadd.f32 %v294, %v358
        %v391 = vadd.f32 %v295, %v359
        %v392 = vadd.f32 %v296, %v360
        %v393 = vadd.f32 %v297, %v361
        %v394 = vadd.f32 %v298, %v362
        %v395 = vadd.f32 %v299, %v363
        %v396 = vadd.f32 %v300, %v364
        %v397 = vadd.f32 %v301, %v365
        %v398 = vadd.f32 %v302, %v366
        %v399 = vadd.f32 %v303, %v367
        %v400 = vadd.f32 %v304, %v368
        %v401 = vadd.f32 %v305, %v369
        %v402 = vadd.f32 %v306, %v370
        %v403 = vadd.f32 %v307, %v371
        %v404 = vld [vmem:[%s240] sm:$0xf]
        %v405 = vld [vmem:[%s240 + $0x4] sm:$0xf]
        %v406 = vld [vmem:[%s240 + $0x8] sm:$0xf]
        %v407 = vld [vmem:[%s240 + $0xc] sm:$0xf]
        %v408 = vld [vmem:[%s240 + $0x10] sm:$0xf]
        %v409 = vld [vmem:[%s240 + $0x14] sm:$0xf]
        %v410 = vld [vmem:[%s240 + $0x18] sm:$0xf]
        %v411 = vld [vmem:[%s240 + $0x1c] sm:$0xf]
        %v412 = vld [vmem:[%s240 + $0x20] sm:$0xf]
        %v413 = vld [vmem:[%s240 + $0x24] sm:$0xf]
        %v414 = vld [vmem:[%s240 + $0x28] sm:$0xf]
        %v415 = vld [vmem:[%s240 + $0x2c] sm:$0xf]
        %v416 = vld [vmem:[%s240 + $0x30] sm:$0xf]
        %v417 = vld [vmem:[%s240 + $0x34] sm:$0xf]
        %v418 = vld [vmem:[%s240 + $0x38] sm:$0xf]
        %v419 = vld [vmem:[%s240 + $0x3c] sm:$0xf]
        %v420 = vld [vmem:[%s240 + $0x40] sm:$0xf]
        %v421 = vld [vmem:[%s240 + $0x44] sm:$0xf]
        %v422 = vld [vmem:[%s240 + $0x48] sm:$0xf]
        %v423 = vld [vmem:[%s240 + $0x4c] sm:$0xf]
        %v424 = vld [vmem:[%s240 + $0x50] sm:$0xf]
        %v425 = vld [vmem:[%s240 + $0x54] sm:$0xf]
        %v426 = vld [vmem:[%s240 + $0x58] sm:$0xf]
        %v427 = vld [vmem:[%s240 + $0x5c] sm:$0xf]
        %v428 = vld [vmem:[%s240 + $0x60] sm:$0xf]
        %v429 = vld [vmem:[%s240 + $0x64] sm:$0xf]
        %v430 = vld [vmem:[%s240 + $0x68] sm:$0xf]
        %v431 = vld [vmem:[%s240 + $0x6c] sm:$0xf]
        %v432 = vld [vmem:[%s240 + $0x70] sm:$0xf]
        %v433 = vld [vmem:[%s240 + $0x74] sm:$0xf]
        %v434 = vld [vmem:[%s240 + $0x78] sm:$0xf]
        %v435 = vld [vmem:[%s240 + $0x7c] sm:$0xf]
        %v436 = vunpack.c.l.bf16 %v404
        %v437 = vunpack.c.l.bf16 %v405
        %v438 = vunpack.c.l.bf16 %v406
        %v439 = vunpack.c.l.bf16 %v407
        %v440 = vunpack.c.l.bf16 %v408
        %v441 = vunpack.c.l.bf16 %v409
        %v442 = vunpack.c.l.bf16 %v410
        %v443 = vunpack.c.l.bf16 %v411
        %v444 = vunpack.c.l.bf16 %v412
        %v445 = vunpack.c.l.bf16 %v413
        %v446 = vunpack.c.l.bf16 %v414
        %v447 = vunpack.c.l.bf16 %v415
        %v448 = vunpack.c.l.bf16 %v416
        %v449 = vunpack.c.l.bf16 %v417
        %v450 = vunpack.c.l.bf16 %v418
        %v451 = vunpack.c.l.bf16 %v419
        %v452 = vunpack.c.l.bf16 %v420
        %v453 = vunpack.c.l.bf16 %v421
        %v454 = vunpack.c.l.bf16 %v422
        %v455 = vunpack.c.l.bf16 %v423
        %v456 = vunpack.c.l.bf16 %v424
        %v457 = vunpack.c.l.bf16 %v425
        %v458 = vunpack.c.l.bf16 %v426
        %v459 = vunpack.c.l.bf16 %v427
        %v460 = vunpack.c.l.bf16 %v428
        %v461 = vunpack.c.l.bf16 %v429
        %v462 = vunpack.c.l.bf16 %v430
        %v463 = vunpack.c.l.bf16 %v431
        %v464 = vunpack.c.l.bf16 %v432
        %v465 = vunpack.c.l.bf16 %v433
        %v466 = vunpack.c.l.bf16 %v434
        %v467 = vunpack.c.l.bf16 %v435
        %v468 = vadd.f32 %v372, %v436
        %v469 = vadd.f32 %v373, %v437
        %v470 = vadd.f32 %v374, %v438
        %v471 = vadd.f32 %v375, %v439
        %v472 = vadd.f32 %v376, %v440
        %v473 = vadd.f32 %v377, %v441
        %v474 = vadd.f32 %v378, %v442
        %v475 = vadd.f32 %v379, %v443
        %v476 = vadd.f32 %v380, %v444
        %v477 = vadd.f32 %v381, %v445
        %v478 = vadd.f32 %v382, %v446
        %v479 = vadd.f32 %v383, %v447
        %v480 = vadd.f32 %v384, %v448
        %v481 = vadd.f32 %v385, %v449
        %v482 = vadd.f32 %v386, %v450
        %v483 = vadd.f32 %v387, %v451
        %v484 = vadd.f32 %v388, %v452
        %v485 = vadd.f32 %v389, %v453
        %v486 = vadd.f32 %v390, %v454
        %v487 = vadd.f32 %v391, %v455
        %v488 = vadd.f32 %v392, %v456
        %v489 = vadd.f32 %v393, %v457
        %v490 = vadd.f32 %v394, %v458
        %v491 = vadd.f32 %v395, %v459
        %v492 = vadd.f32 %v396, %v460
        %v493 = vadd.f32 %v397, %v461
        %v494 = vadd.f32 %v398, %v462
        %v495 = vadd.f32 %v399, %v463
        %v496 = vadd.f32 %v400, %v464
        %v497 = vadd.f32 %v401, %v465
        %v498 = vadd.f32 %v402, %v466
        %v499 = vadd.f32 %v403, %v467
        %v500 = vpack.c.bf16 %v469, %v468
        %v501 = vpack.c.bf16 %v471, %v470
        %v502 = vpack.c.bf16 %v473, %v472
        %v503 = vpack.c.bf16 %v475, %v474
        %v504 = vpack.c.bf16 %v477, %v476
        %v505 = vpack.c.bf16 %v479, %v478
        %v506 = vpack.c.bf16 %v481, %v480
        %v507 = vpack.c.bf16 %v483, %v482
        %v508 = vpack.c.bf16 %v485, %v484
        %v509 = vpack.c.bf16 %v487, %v486
        %v510 = vpack.c.bf16 %v489, %v488
        %v511 = vpack.c.bf16 %v491, %v490
        %v512 = vpack.c.bf16 %v493, %v492
        %v513 = vpack.c.bf16 %v495, %v494
        %v514 = vpack.c.bf16 %v497, %v496
        %v515 = vpack.c.bf16 %v499, %v498
        %v516 = vld [vmem:[%s3] sm:$0xf]
        %v517 = vld [vmem:[%s3 + $0x4] sm:$0xf]
        %v518 = vld [vmem:[%s3 + $0x8] sm:$0xf]
        %v519 = vld [vmem:[%s3 + $0xc] sm:$0xf]
        %v524 = vunpack.c.l.b16 %v516
        %v525 = vunpack.c.l.b16 %v517
        %v526 = vunpack.c.l.b16 %v518
        %v527 = vunpack.c.l.b16 %v519
        %v528 = vpack.c.b16 %v525, %v524
        %v529 = vpack.c.b16 %v527, %v526
        %vm532 = vcmask 261120
        %v534 = vsel %vm532, %v500, 0
        %v537 = vsel %vm532, %v501, 0
        %v540 = vsel %vm532, %v502, 0
        %v543 = vsel %vm532, %v503, 0
        %v546 = vsel %vm532, %v504, 0
        %v549 = vsel %vm532, %v505, 0
        %v552 = vsel %vm532, %v506, 0
        %v555 = vsel %vm532, %v507, 0
        %v558 = vsel %vm532, %v508, 0
        %v561 = vsel %vm532, %v509, 0
        %v564 = vsel %vm532, %v510, 0
        %v567 = vsel %vm532, %v511, 0
        %v570 = vsel %vm532, %v512, 0
        %v573 = vsel %vm532, %v513, 0
        %v576 = vsel %vm532, %v514, 0
        %v579 = vsel %vm532, %v515, 0
        %581 = vmatpush.bf16.msra.mxu0 0
        %582 = vmatpush.bf16.msra.mxu0 0
        %583 = vmatpush.bf16.msra.mxu0 0
        %584 = vmatpush.bf16.msra.mxu0 0
        %585 = vmatpush.bf16.msra.mxu0 0
        %586 = vmatpush.bf16.msra.mxu0 0
        %587 = vmatpush.bf16.msra.mxu0 %v529
        %588 = vmatpush.bf16.msra.mxu0 %v528
        %589 = vmatmul.bf16.gmra.mxu0 %v534
        %v590 = vpop.f32.mrf.mxu0
        %v591 = vadd.f32 0.0, %v590
        %v592 = vpop.f32.mrf.mxu0
        %v593 = vadd.f32 0.0, %v592
        %594 = vmatmul.bf16.gmra.mxu0 %v537
        %v595 = vpop.f32.mrf.mxu0
        %v596 = vadd.f32 0.0, %v595
        %v597 = vpop.f32.mrf.mxu0
        %v598 = vadd.f32 0.0, %v597
        %599 = vmatmul.bf16.gmra.mxu0 %v540
        %v600 = vpop.f32.mrf.mxu0
        %v601 = vadd.f32 0.0, %v600
        %v602 = vpop.f32.mrf.mxu0
        %v603 = vadd.f32 0.0, %v602
        %604 = vmatmul.bf16.gmra.mxu0 %v543
        %v605 = vpop.f32.mrf.mxu0
        %v606 = vadd.f32 0.0, %v605
        %v607 = vpop.f32.mrf.mxu0
        %v608 = vadd.f32 0.0, %v607
        %609 = vmatmul.bf16.gmra.mxu0 %v546
        %v610 = vpop.f32.mrf.mxu0
        %v611 = vadd.f32 0.0, %v610
        %v612 = vpop.f32.mrf.mxu0
        %v613 = vadd.f32 0.0, %v612
        %614 = vmatmul.bf16.gmra.mxu0 %v549
        %v615 = vpop.f32.mrf.mxu0
        %v616 = vadd.f32 0.0, %v615
        %v617 = vpop.f32.mrf.mxu0
        %v618 = vadd.f32 0.0, %v617
        %619 = vmatmul.bf16.gmra.mxu0 %v552
        %v620 = vpop.f32.mrf.mxu0
        %v621 = vadd.f32 0.0, %v620
        %v622 = vpop.f32.mrf.mxu0
        %v623 = vadd.f32 0.0, %v622
        %624 = vmatmul.bf16.gmra.mxu0 %v555
        %v625 = vpop.f32.mrf.mxu0
        %v626 = vadd.f32 0.0, %v625
        %v627 = vpop.f32.mrf.mxu0
        %v628 = vadd.f32 0.0, %v627
        %629 = vmatmul.bf16.gmra.mxu0 %v558
        %v630 = vpop.f32.mrf.mxu0
        %v631 = vadd.f32 0.0, %v630
        %v632 = vpop.f32.mrf.mxu0
        %v633 = vadd.f32 0.0, %v632
        %634 = vmatmul.bf16.gmra.mxu0 %v561
        %v635 = vpop.f32.mrf.mxu0
        %v636 = vadd.f32 0.0, %v635
        %v637 = vpop.f32.mrf.mxu0
        %v638 = vadd.f32 0.0, %v637
        %639 = vmatmul.bf16.gmra.mxu0 %v564
        %v640 = vpop.f32.mrf.mxu0
        %v641 = vadd.f32 0.0, %v640
        %v642 = vpop.f32.mrf.mxu0
        %v643 = vadd.f32 0.0, %v642
        %644 = vmatmul.bf16.gmra.mxu0 %v567
        %v645 = vpop.f32.mrf.mxu0
        %v646 = vadd.f32 0.0, %v645
        %v647 = vpop.f32.mrf.mxu0
        %v648 = vadd.f32 0.0, %v647
        %649 = vmatmul.bf16.gmra.mxu0 %v570
        %v650 = vpop.f32.mrf.mxu0
        %v651 = vadd.f32 0.0, %v650
        %v652 = vpop.f32.mrf.mxu0
        %v653 = vadd.f32 0.0, %v652
        %654 = vmatmul.bf16.gmra.mxu0 %v573
        %v655 = vpop.f32.mrf.mxu0
        %v656 = vadd.f32 0.0, %v655
        %v657 = vpop.f32.mrf.mxu0
        %v658 = vadd.f32 0.0, %v657
        %659 = vmatmul.bf16.gmra.mxu0 %v576
        %v660 = vpop.f32.mrf.mxu0
        %v661 = vadd.f32 0.0, %v660
        %v662 = vpop.f32.mrf.mxu0
        %v663 = vadd.f32 0.0, %v662
        %664 = vmatmul.bf16.gmra.mxu0 %v579
        %v665 = vpop.f32.mrf.mxu0
        %v666 = vadd.f32 0.0, %v665
        %v667 = vpop.f32.mrf.mxu0
        %v668 = vadd.f32 0.0, %v667
        %669 = vdwg.mxu0
        %vm670 = vcmask 523264
        %671 = vst.msk [vmem:[%s223] sm:$0xff] %vm670, %v591
        %672 = vst.msk [vmem:[%s223 + $0x8] sm:$0xff] %vm670, %v593
        %673 = vst.msk [vmem:[%s223 + $0x10] sm:$0xff] %vm670, %v596
        %674 = vst.msk [vmem:[%s223 + $0x18] sm:$0xff] %vm670, %v598
        %675 = vst.msk [vmem:[%s223 + $0x20] sm:$0xff] %vm670, %v601
        %676 = vst.msk [vmem:[%s223 + $0x28] sm:$0xff] %vm670, %v603
        %677 = vst.msk [vmem:[%s223 + $0x30] sm:$0xff] %vm670, %v606
        %678 = vst.msk [vmem:[%s223 + $0x38] sm:$0xff] %vm670, %v608
        %679 = vst.msk [vmem:[%s223 + $0x40] sm:$0xff] %vm670, %v611
        %680 = vst.msk [vmem:[%s223 + $0x48] sm:$0xff] %vm670, %v613
        %681 = vst.msk [vmem:[%s223 + $0x50] sm:$0xff] %vm670, %v616
        %682 = vst.msk [vmem:[%s223 + $0x58] sm:$0xff] %vm670, %v618
        %683 = vst.msk [vmem:[%s223 + $0x60] sm:$0xff] %vm670, %v621
        %684 = vst.msk [vmem:[%s223 + $0x68] sm:$0xff] %vm670, %v623
        %685 = vst.msk [vmem:[%s223 + $0x70] sm:$0xff] %vm670, %v626
        %686 = vst.msk [vmem:[%s223 + $0x78] sm:$0xff] %vm670, %v628
        %687 = vst.msk [vmem:[%s223 + $0x80] sm:$0xff] %vm670, %v631
        %688 = vst.msk [vmem:[%s223 + $0x88] sm:$0xff] %vm670, %v633
        %689 = vst.msk [vmem:[%s223 + $0x90] sm:$0xff] %vm670, %v636
        %690 = vst.msk [vmem:[%s223 + $0x98] sm:$0xff] %vm670, %v638
        %691 = vst.msk [vmem:[%s223 + $0xa0] sm:$0xff] %vm670, %v641
        %692 = vst.msk [vmem:[%s223 + $0xa8] sm:$0xff] %vm670, %v643
        %693 = vst.msk [vmem:[%s223 + $0xb0] sm:$0xff] %vm670, %v646
        %694 = vst.msk [vmem:[%s223 + $0xb8] sm:$0xff] %vm670, %v648
        %695 = vst.msk [vmem:[%s223 + $0xc0] sm:$0xff] %vm670, %v651
        %696 = vst.msk [vmem:[%s223 + $0xc8] sm:$0xff] %vm670, %v653
        %697 = vst.msk [vmem:[%s223 + $0xd0] sm:$0xff] %vm670, %v656
        %698 = vst.msk [vmem:[%s223 + $0xd8] sm:$0xff] %vm670, %v658
        %699 = vst.msk [vmem:[%s223 + $0xe0] sm:$0xff] %vm670, %v661
        %700 = vst.msk [vmem:[%s223 + $0xe8] sm:$0xff] %vm670, %v663
        %701 = vst.msk [vmem:[%s223 + $0xf0] sm:$0xff] %vm670, %v666
        %702 = vst.msk [vmem:[%s223 + $0xf8] sm:$0xff] %vm670, %v668
        %s703 = sand.u32 %s125, 1
        %s704 = scalar_lea.sflag [#allocation3], %s703
        %s705 = sand.u32 %s125, 1
        %s706 = smul.addr %s705, 256
        %s707 = scalar_lea.vmem [#allocation2], %s706
        // Predicated region
        $region37: #{_lambda_.7} parent=35 // pred_check
          %p708 = pneg %p135
        $region38: #{_lambda_.7} parent=35 // pred_check_branch
          %710 = sbr.rel (%p708) target = $region40
        $region39: #{_lambda_.7} parent=35 // pred_region
          %s711 = smul.u32 32, %s18
          %713 = vsyncadd %s704, 0
          %s714 = smul.addr %s711, 8
          %s715 = scalar_lea.hbm %s4, %s714
          %s716 = sshll.u32 %s707, 4
          %s717 = int_to_ptr.vmem [resolvable:$true] %s716
          %s718 = sshll.u32 %s715, 4
          %s719 = int_to_ptr.hbm [resolvable:$true] %s718
          %724 = dma.vmem_to_hbm [thread:$0]  %s717, 4096, %s719, %s704, 128, 128, 8
        $region40: #{_lambda_.7} parent=35 // pred_fallthru
          _
      $region36: #{_lambda_.7} parent=5 // pred_fallthru
        _
      %p725 = scmp.le.s32.totalorder 2, %s13
      // Predicated region
      $region41: #{_lambda_.7} parent=5 // pred_check
        %p726 = pneg %p725
      $region42: #{_lambda_.7} parent=5 // pred_check_branch
        %728 = sbr.rel (%p726) target = $region44
      $region43: #{_lambda_.7} parent=5 // pred_region
        %s729 = ssub.s32 %s13, 2
        // Predicated region
        $region45: #{_lambda_.7} parent=43 // pred_check
          %p730 = pneg %p141
        $region46: #{_lambda_.7} parent=43 // pred_check_branch
          %732 = sbr.rel (%p730) target = $region48
        $region47: #{_lambda_.7} parent=43 // pred_region
          %s733 = sand.u32 %s126, 1
          %s734 = scalar_lea.sflag [#allocation3], %s733
          %s735 = sand.u32 %s126, 1
          %s736 = smul.addr %s735, 256
          %s737 = scalar_lea.vmem [#allocation2], %s736
          %739 = dma.done %s734, 4096
        $region48: #{_lambda_.7} parent=43 // pred_fallthru
          _
      $region44: #{_lambda_.7} parent=5 // pred_fallthru
        _
    $region6: #{_lambda_.7} parent=1 // loop_footer
      %s17 = sadd.s32 1, %s13
    $region7: #{_lambda_.7} parent=1 // loop_footer_branch
      %12 = sbr.rel target = $region3
    $region8: #{_lambda_.7} parent=1 // loop_exit
      _
    %740 = vsyncpa [#allocation3], 1
    %s741 = scalar_lea.sflag [#allocation3], 1
    %742 = vsyncpa %s741, 1

</llo_original>
